<compile_context>
chip_gen: v7x
topology: tpu7x:2x2x1
jax: 0.10.0
libtpu: 0.0.40
codegen_flags: <defaults>
</compile_context>

<pallas_src>
import numpy as np
import jax
import jax.numpy as jnp
from jax.experimental import pallas as pl
from jax.experimental.pallas import tpu as pltpu

MOMENTUM = 0.9  # EMA momentum (default in the PyTorch module)


def _round_up(x, m):
    return ((x + m - 1) // m) * m


def _vmem_capacity_bytes():
    """Per-core VMEM capacity; conservative 64 MiB (v7x) fallback."""
    try:
        info = pltpu.get_tpu_info()
        cap = getattr(info, "vmem_capacity_bytes", None)
        if cap:
            return int(cap)
    except Exception:
        pass
    return 64 * 1024 * 1024


def sparse_coder_kernel(x_ref, w_ref, b_ref, recon_ref, code_ref, csum_ref):
    """Fused encode -> decode for one (batch tile, latent tile) grid point.

    x_ref    : VMEM (TB, Dp) f32    flattened input tile (resident across l)
    w_ref    : VMEM (Dp, TL) bf16   dictionary tile (resident or streamed)
    b_ref    : VMEM (1, Dp)  f32    bias (resident)
    recon_ref: VMEM (TB, Dp) f32    reconstruction tile (accumulated over l)
    code_ref : VMEM (TB, TL) f32    sparse code tile
    csum_ref : VMEM (8, TL)  f32    8-row partial column sums of the code tile
    """
    l = pl.program_id(1)

    x = x_ref[...].astype(jnp.bfloat16)                       # cast in-kernel

    # encode (synthetic): relu(x @ W[:, tile]) -> (TB, TL), f32 MXU accumulation
    code = jnp.maximum(
        jnp.dot(x, w_ref[...], preferred_element_type=jnp.float32), 0.0)
    code_ref[...] = code

    # 8-row partial column sums for code.mean(0) / EMA (padded rows are zero)
    tb, tl = code.shape
    csum_ref[...] = jnp.sum(code.reshape(tb // 8, 8, tl), axis=0)

    # decode partial: code @ W[:, tile].T — contract the latent dim of both
    # operands so only ONE copy of the dictionary is needed in VMEM.
    part = jax.lax.dot_general(
        code.astype(jnp.bfloat16), w_ref[...],
        dimension_numbers=(((1,), (1,)), ((), ())),
        preferred_element_type=jnp.float32)

    @pl.when(l == 0)
    def _():
        recon_ref[...] = part + b_ref[...]

    @pl.when(l != 0)
    def _():
        recon_ref[...] += part


def sparse_coder_forward(x, weight, bias, running_mean, step, *, tile_b=1024):
    """One SparseCoder.forward. Returns (recon, code, new_running_mean, new_step)."""
    B = x.shape[0]
    in_shape = tuple(x.shape[1:])
    D = int(np.prod(in_shape))
    L = weight.shape[1]

    Dp = _round_up(D, 128)          # lane-pad feature dim
    Lp = _round_up(L, 128)          # lane-pad latent dim

    # ---------------- generation-aware VMEM budget ----------------
    vmem_cap = _vmem_capacity_bytes()
    budget = int(vmem_cap * 0.84)   # ~54 MiB on 64 MiB (v7x), ~107 MiB on 128 MiB

    # ---------------- latent (L) tiling ----------------
    w_full_bytes = Dp * Lp * 2                                # bf16, 1x buffered
    if w_full_bytes <= budget // 3:
        TL, n_l_tiles = Lp, 1
        w_vmem = w_full_bytes                                 # fully resident
    else:
        TL = ((budget // 3) // (2 * 2 * Dp)) // 128 * 128     # dbl-buffered bf16
        TL = max(128, min(TL, Lp))
        Lp = _round_up(Lp, TL)
        n_l_tiles = Lp // TL
        w_vmem = 2 * Dp * TL * 2
    bias_vmem = Dp * 4

    # ---------------- batch (B) tiling: grow TB toward the budget ----------------
    def tile_vmem(tb):
        io = 2 * (tb * Dp * 4        # x f32 in  (double-buffered)
                  + tb * Dp * 4      # recon f32 out
                  + tb * TL * 4      # code f32 out
                  + 8 * TL * 4)      # csum f32 out
        live = tb * Dp * 2 + tb * TL * (4 + 2) + tb * Dp * 4  # x bf16, code f32+bf16, partial
        return io + live

    if w_vmem + bias_vmem + tile_vmem(8) > budget:
        raise ValueError(
            "SparseCoder kernel: dictionary tile + minimum batch tile exceed the "
            f"VMEM budget ({budget} B); feature-dim (D) tiling is not implemented.")

    tb_cap = min(_round_up(max(B, 1), 8), _round_up(tile_b, 8))
    TB = 8
    cand = 16
    while cand <= tb_cap:
        if w_vmem + bias_vmem + tile_vmem(cand) <= budget:
            TB = cand
        cand *= 2
    if tb_cap > TB and w_vmem + bias_vmem + tile_vmem(tb_cap) <= budget:
        TB = tb_cap

    vmem_limit = int(min(vmem_cap - (2 << 20),
                         w_vmem + bias_vmem + tile_vmem(TB) + (8 << 20)))

    Bp = _round_up(max(B, 1), TB)
    NBT = Bp // TB

    # ---------------- operand prep (pad only when actually needed) ----------------
    x_flat = x.reshape(B, D).astype(jnp.float32)
    if Bp == B and Dp == D:
        x_in = x_flat                                  # no extra HBM pass
    else:
        x_in = jnp.zeros((Bp, Dp), jnp.float32).at[:B, :D].set(x_flat)

    # TODO(synk): in a training loop the bf16 (padded) dictionary could be cached
    # across forward calls; it only changes when the optimizer steps.
    w_bf = weight.astype(jnp.bfloat16)
    if (D, L) == (Dp, Lp):
        w_in = w_bf
    else:
        w_in = jnp.zeros((Dp, Lp), jnp.bfloat16).at[:D, :L].set(w_bf)

    b_f32 = bias.astype(jnp.float32)
    if D == Dp:
        b_in = b_f32.reshape(1, D)
    else:
        b_in = jnp.zeros((1, Dp), jnp.float32).at[0, :D].set(b_f32)

    # ---------------- cost hint ----------------
    flops = 2 * 2 * Bp * Dp * Lp                       # encode + decode matmuls
    w_reads = 1 if n_l_tiles == 1 else NBT             # W re-streamed per batch tile
    bytes_accessed = (Bp * Dp * 4                      # x f32 in
                      + Bp * Dp * 4                    # recon f32 out
                      + Bp * Lp * 4                    # code f32 out
                      + NBT * 8 * Lp * 4               # csum out
                      + w_reads * Dp * Lp * 2          # W bf16
                      + Dp * 4)                        # bias

    def run(single_buffer_resident):
        resident_kw = ({"pipeline_mode": pl.Buffered(1)}
                       if single_buffer_resident else {})
        if n_l_tiles == 1:
            w_spec = pl.BlockSpec((Dp, TL), lambda i, l: (0, 0), **resident_kw)
        else:
            w_spec = pl.BlockSpec((Dp, TL), lambda i, l: (0, l))  # streamed, dbl-buffered
        b_spec = pl.BlockSpec((1, Dp), lambda i, l: (0, 0), **resident_kw)
        return pl.pallas_call(
            sparse_coder_kernel,
            out_shape=(
                jax.ShapeDtypeStruct((Bp, Dp), jnp.float32),       # recon (flat, padded)
                jax.ShapeDtypeStruct((Bp, Lp), jnp.float32),       # code (padded)
                jax.ShapeDtypeStruct((NBT * 8, Lp), jnp.float32),  # partial column sums
            ),
            grid_spec=pltpu.PrefetchScalarGridSpec(
                num_scalar_prefetch=0,
                grid=(NBT, n_l_tiles),
                in_specs=[
                    pl.BlockSpec((TB, Dp), lambda i, l: (i, 0)),   # x tile (resident over l)
                    w_spec,                                        # dictionary
                    b_spec,                                        # bias
                ],
                out_specs=(
                    pl.BlockSpec((TB, Dp), lambda i, l: (i, 0)),   # recon (accumulated over l)
                    pl.BlockSpec((TB, TL), lambda i, l: (i, l)),   # code tile
                    pl.BlockSpec((8, TL), lambda i, l: (i, l)),    # partial column sums
                ),
            ),
            compiler_params=pltpu.CompilerParams(
                dimension_semantics=("parallel", "arbitrary"),     # batch megacore, L reduction
                vmem_limit_bytes=vmem_limit,
            ),
            cost_estimate=pl.CostEstimate(
                flops=flops, transcendentals=0, bytes_accessed=bytes_accessed),
        )(x_in, w_in, b_in)

    try:
        recon_p, code_p, csum_p = run(True)
    except Exception:
        # Fallback if pipeline_mode=pl.Buffered(1) is rejected on this jax build.
        recon_p, code_p, csum_p = run(False)

    recon = recon_p[:B, :D].reshape((B,) + in_shape)   # nn.Unflatten(1, in_shape)
    code = code_p[:B, :L]

    # loading_ema.update(code.mean(dim=0)) — finished from the tiny per-tile
    # partial sums, so the full (B, L) code tensor is never re-read from HBM.
    mean = jnp.sum(csum_p, axis=0)[:L] / B
    new_rm = jnp.where(step == 0, mean,
                       MOMENTUM * running_mean + (1.0 - MOMENTUM) * mean)
    return recon, code, new_rm, step + 1


if __name__ == "__main__":
    # Small shapes consistent with the module: x (B, C, H, W), in_shape=(C,H,W)
    B, C, H, W = 2, 4, 16, 16
    in_shape = (C, H, W)
    in_features = C * H * W          # 1024
    latent_dim = 32

    key = jax.random.PRNGKey(0)
    kx, kw, kb = jax.random.split(key, 3)

    x = jax.random.normal(kx, (B, C, H, W), dtype=jnp.float32)

    # Deterministic init mimicking nn.Linear(latent_dim, in_features):
    # weight (in_features, latent_dim), bias (in_features,), U(-1/sqrt(L), 1/sqrt(L))
    bound = 1.0 / np.sqrt(latent_dim)
    weight = jax.random.uniform(kw, (in_features, latent_dim),
                                minval=-bound, maxval=bound, dtype=jnp.float32)
    bias = jax.random.uniform(kb, (in_features,),
                              minval=-bound, maxval=bound, dtype=jnp.float32)

    # Fresh EMA buffers (step == 0 -> running_mean is copied from code.mean(0))
    running_mean = jnp.zeros((latent_dim,), dtype=jnp.float32)
    step = jnp.array(0, dtype=jnp.int32)

    recon, code, new_rm, new_step = sparse_coder_forward(
        x, weight, bias, running_mean, step)
    jax.block_until_ready((recon, code, new_rm, new_step))

    assert recon.shape == (B,) + in_shape
    assert code.shape == (B, latent_dim)
    assert new_rm.shape == (latent_dim,)
    assert int(new_step) == 1

    # pure-JAX reference (f32); loose tolerance because MXU operands are bf16
    xf = x.reshape(B, in_features)
    code_ref = jnp.maximum(xf @ weight, 0.0)
    recon_ref = (code_ref @ weight.T + bias).reshape((B,) + in_shape)
    rm_ref = jnp.mean(code_ref, axis=0)
    np.testing.assert_allclose(np.asarray(code), np.asarray(code_ref),
                               rtol=5e-2, atol=1e-1)
    np.testing.assert_allclose(np.asarray(recon), np.asarray(recon_ref),
                               rtol=5e-2, atol=1e-1)
    np.testing.assert_allclose(np.asarray(new_rm), np.asarray(rm_ref),
                               rtol=5e-2, atol=1e-1)

    print("KERNEL_OK")
</pallas_src>

<mosaic_0001>
module attributes {stable_mosaic.version = 11 : i64} {
  func.func @sparse_coder_kernel(%arg0: i32, %arg1: i32, %arg2: memref<8x1024xf32, #tpu.memory_space<vmem>>, %arg3: memref<1024x128xbf16, #tpu.memory_space<vmem>>, %arg4: memref<1x1024xf32, #tpu.memory_space<vmem>>, %arg5: memref<8x1024xf32, #tpu.memory_space<vmem>>, %arg6: memref<8x128xf32, #tpu.memory_space<vmem>>, %arg7: memref<8x128xf32, #tpu.memory_space<vmem>>) attributes {dimension_semantics = [#tpu.dimension_semantics<parallel>, #tpu.dimension_semantics<arbitrary>], iteration_bounds = array<i64: 1, 1>, scalar_prefetch = 0 : i64, scratch_operands = 0 : i64, tpu.core_type = #tpu.core_type<tc>, window_params = [{transform_indices = @transform_0, window_bounds = array<i64: 8, 1024>}, {pipeline_mode = #tpu.pipeline_mode<synchronous>, transform_indices = @transform_1, window_bounds = array<i64: 1024, 128>}, {pipeline_mode = #tpu.pipeline_mode<synchronous>, transform_indices = @transform_2, window_bounds = array<i64: 1, 1024>}, {transform_indices = @transform_3, window_bounds = array<i64: 8, 1024>}, {transform_indices = @transform_4, window_bounds = array<i64: 8, 128>}, {transform_indices = @transform_5, window_bounds = array<i64: 8, 128>}]} {
    %c0 = arith.constant 0 : index
    %c0_0 = arith.constant 0 : index
    %0 = vector.load %arg2[%c0, %c0_0] : memref<8x1024xf32, #tpu.memory_space<vmem>>, vector<8x1024xf32>
    %1 = arith.truncf %0 : vector<8x1024xf32> to vector<8x1024xbf16>
    %c0_1 = arith.constant 0 : index
    %c0_2 = arith.constant 0 : index
    %2 = vector.load %arg3[%c0_1, %c0_2] : memref<1024x128xbf16, #tpu.memory_space<vmem>>, vector<1024x128xbf16>
    %cst = arith.constant dense<0.000000e+00> : vector<8x128xf32>
    %3 = tpu.matmul %1, %2, %cst {dimension_numbers = #tpu.dot_dimension_numbers<[1], [0], [0], [1], [0, 0, 1, 1], [], []>} : vector<8x1024xbf16>, vector<1024x128xbf16>, vector<8x128xf32> -> vector<8x128xf32>
    %cst_3 = arith.constant 0.000000e+00 : f32
    %4 = vector.broadcast %cst_3 : f32 to vector<8x128xf32>
    %5 = arith.maximumf %3, %4 : vector<8x128xf32>
    %c0_4 = arith.constant 0 : index
    %c0_5 = arith.constant 0 : index
    %6 = vector.load %arg6[%c0_4, %c0_5] : memref<8x128xf32, #tpu.memory_space<vmem>>, vector<8x128xf32>
    tpu.vector_store %arg6[%c0_4, %c0_5], %5 {strides = array<i32>} : memref<8x128xf32, #tpu.memory_space<vmem>>, vector<8x128xf32>,
    %7 = vector.shape_cast %5 : vector<8x128xf32> to vector<1x8x128xf32>
    %cst_6 = arith.constant dense<0.000000e+00> : vector<8x128xf32>
    %8 = vector.multi_reduction <add>, %7, %cst_6 [0] : vector<1x8x128xf32> to vector<8x128xf32>
    %c0_7 = arith.constant 0 : index
    %c0_8 = arith.constant 0 : index
    %9 = vector.load %arg7[%c0_7, %c0_8] : memref<8x128xf32, #tpu.memory_space<vmem>>, vector<8x128xf32>
    tpu.vector_store %arg7[%c0_7, %c0_8], %8 {strides = array<i32>} : memref<8x128xf32, #tpu.memory_space<vmem>>, vector<8x128xf32>,
    %10 = arith.truncf %5 : vector<8x128xf32> to vector<8x128xbf16>
    %c0_9 = arith.constant 0 : index
    %c0_10 = arith.constant 0 : index
    %11 = vector.load %arg3[%c0_9, %c0_10] : memref<1024x128xbf16, #tpu.memory_space<vmem>>, vector<1024x128xbf16>
    %cst_11 = arith.constant dense<0.000000e+00> : vector<8x1024xf32>
    %12 = tpu.matmul %10, %11, %cst_11 {dimension_numbers = #tpu.dot_dimension_numbers<[1], [1], [0], [0], [0, 0, 1, 0], [], []>} : vector<8x128xbf16>, vector<1024x128xbf16>, vector<8x1024xf32> -> vector<8x1024xf32>
    %c0_i32 = arith.constant 0 : i32
    %13 = arith.cmpi eq, %arg1, %c0_i32 : i32
    %14 = arith.extui %13 : i1 to i32
    %c0_i32_12 = arith.constant 0 : i32
    %15 = arith.cmpi ne, %14, %c0_i32_12 : i32
    scf.if %15 {
      %c0_15 = arith.constant 0 : index
      %c0_16 = arith.constant 0 : index
      %19 = vector.load %arg4[%c0_15, %c0_16] : memref<1x1024xf32, #tpu.memory_space<vmem>>, vector<1x1024xf32>
      %20 = vector.broadcast %19 : vector<1x1024xf32> to vector<8x1024xf32>
      %21 = arith.addf %12, %20 : vector<8x1024xf32>
      %c0_17 = arith.constant 0 : index
      %c0_18 = arith.constant 0 : index
      %22 = vector.load %arg5[%c0_17, %c0_18] : memref<8x1024xf32, #tpu.memory_space<vmem>>, vector<8x1024xf32>
      tpu.vector_store %arg5[%c0_17, %c0_18], %21 {strides = array<i32>} : memref<8x1024xf32, #tpu.memory_space<vmem>>, vector<8x1024xf32>,
    } else {
    }
    %c0_i32_13 = arith.constant 0 : i32
    %16 = arith.cmpi ne, %arg1, %c0_i32_13 : i32
    %17 = arith.extui %16 : i1 to i32
    %c0_i32_14 = arith.constant 0 : i32
    %18 = arith.cmpi ne, %17, %c0_i32_14 : i32
    scf.if %18 {
      %c0_15 = arith.constant 0 : index
      %c0_16 = arith.constant 0 : index
      %19 = vector.load %arg5[%c0_15, %c0_16] : memref<8x1024xf32, #tpu.memory_space<vmem>>, vector<8x1024xf32>
      %20 = arith.addf %19, %12 : vector<8x1024xf32>
      %c0_17 = arith.constant 0 : index
      %c0_18 = arith.constant 0 : index
      %21 = vector.load %arg5[%c0_17, %c0_18] : memref<8x1024xf32, #tpu.memory_space<vmem>>, vector<8x1024xf32>
      tpu.vector_store %arg5[%c0_17, %c0_18], %20 {strides = array<i32>} : memref<8x1024xf32, #tpu.memory_space<vmem>>, vector<8x1024xf32>,
    } else {
    }
    return
  }
  func.func @transform_0(%arg0: i32, %arg1: i32) -> (i32, i32) {
    %c0_i32 = arith.constant 0 : i32
    %c0_i32_0 = arith.constant 0 : i32
    return %arg0, %c0_i32 : i32, i32
  }
  func.func @transform_1(%arg0: i32, %arg1: i32) -> (i32, i32) {
    %c0_i32 = arith.constant 0 : i32
    %c0_i32_0 = arith.constant 0 : i32
    %c0_i32_1 = arith.constant 0 : i32
    return %c0_i32, %c0_i32_0 : i32, i32
  }
  func.func @transform_2(%arg0: i32, %arg1: i32) -> (i32, i32) {
    %c0_i32 = arith.constant 0 : i32
    %c0_i32_0 = arith.constant 0 : i32
    %c0_i32_1 = arith.constant 0 : i32
    return %c0_i32, %c0_i32_0 : i32, i32
  }
  func.func @transform_3(%arg0: i32, %arg1: i32) -> (i32, i32) {
    %c0_i32 = arith.constant 0 : i32
    %c0_i32_0 = arith.constant 0 : i32
    return %arg0, %c0_i32 : i32, i32
  }
  func.func @transform_4(%arg0: i32, %arg1: i32) -> (i32, i32) {
    %c0_i32 = arith.constant 0 : i32
    return %arg0, %arg1 : i32, i32
  }
  func.func @transform_5(%arg0: i32, %arg1: i32) -> (i32, i32) {
    %c0_i32 = arith.constant 0 : i32
    return %arg0, %arg1 : i32, i32
  }
}

module attributes {stable_mosaic.version = 11 : i64} {
  func.func @sparse_coder_kernel(%arg0: i32, %arg1: i32, %arg2: memref<8x1024xf32, #tpu.memory_space<vmem>>, %arg3: memref<1024x128xbf16, #tpu.memory_space<vmem>>, %arg4: memref<1x1024xf32, #tpu.memory_space<vmem>>, %arg5: memref<8x1024xf32, #tpu.memory_space<vmem>>, %arg6: memref<8x128xf32, #tpu.memory_space<vmem>>, %arg7: memref<8x128xf32, #tpu.memory_space<vmem>>) attributes {dimension_semantics = [#tpu.dimension_semantics<parallel>, #tpu.dimension_semantics<arbitrary>], iteration_bounds = array<i64: 1, 1>, scalar_prefetch = 0 : i64, scratch_operands = 0 : i64, tpu.core_type = #tpu.core_type<tc>, window_params = [{transform_indices = @transform_0, window_bounds = array<i64: 8, 1024>}, {pipeline_mode = #tpu.pipeline_mode<synchronous>, transform_indices = @transform_1, window_bounds = array<i64: 1024, 128>}, {pipeline_mode = #tpu.pipeline_mode<synchronous>, transform_indices = @transform_2, window_bounds = array<i64: 1, 1024>}, {transform_indices = @transform_3, window_bounds = array<i64: 8, 1024>}, {transform_indices = @transform_4, window_bounds = array<i64: 8, 128>}, {transform_indices = @transform_5, window_bounds = array<i64: 8, 128>}]} {
    %c0 = arith.constant 0 : index
    %c0_0 = arith.constant 0 : index
    %0 = vector.load %arg2[%c0, %c0_0] : memref<8x1024xf32, #tpu.memory_space<vmem>>, vector<8x1024xf32>
    %1 = arith.truncf %0 : vector<8x1024xf32> to vector<8x1024xbf16>
    %c0_1 = arith.constant 0 : index
    %c0_2 = arith.constant 0 : index
    %2 = vector.load %arg3[%c0_1, %c0_2] : memref<1024x128xbf16, #tpu.memory_space<vmem>>, vector<1024x128xbf16>
    %cst = arith.constant dense<0.000000e+00> : vector<8x128xf32>
    %3 = tpu.matmul %1, %2, %cst {dimension_numbers = #tpu.dot_dimension_numbers<[1], [0], [0], [1], [0, 0, 1, 1], [], []>} : vector<8x1024xbf16>, vector<1024x128xbf16>, vector<8x128xf32> -> vector<8x128xf32>
    %cst_3 = arith.constant 0.000000e+00 : f32
    %4 = vector.broadcast %cst_3 : f32 to vector<8x128xf32>
    %5 = arith.maximumf %3, %4 : vector<8x128xf32>
    %c0_4 = arith.constant 0 : index
    %c0_5 = arith.constant 0 : index
    %6 = vector.load %arg6[%c0_4, %c0_5] : memref<8x128xf32, #tpu.memory_space<vmem>>, vector<8x128xf32>
    tpu.vector_store %arg6[%c0_4, %c0_5], %5 {strides = array<i32>} : memref<8x128xf32, #tpu.memory_space<vmem>>, vector<8x128xf32>,
    %7 = vector.shape_cast %5 : vector<8x128xf32> to vector<1x8x128xf32>
    %cst_6 = arith.constant dense<0.000000e+00> : vector<8x128xf32>
    %8 = vector.multi_reduction <add>, %7, %cst_6 [0] : vector<1x8x128xf32> to vector<8x128xf32>
    %c0_7 = arith.constant 0 : index
    %c0_8 = arith.constant 0 : index
    %9 = vector.load %arg7[%c0_7, %c0_8] : memref<8x128xf32, #tpu.memory_space<vmem>>, vector<8x128xf32>
    tpu.vector_store %arg7[%c0_7, %c0_8], %8 {strides = array<i32>} : memref<8x128xf32, #tpu.memory_space<vmem>>, vector<8x128xf32>,
    %10 = arith.truncf %5 : vector<8x128xf32> to vector<8x128xbf16>
    %c0_9 = arith.constant 0 : index
    %c0_10 = arith.constant 0 : index
    %11 = vector.load %arg3[%c0_9, %c0_10] : memref<1024x128xbf16, #tpu.memory_space<vmem>>, vector<1024x128xbf16>
    %cst_11 = arith.constant dense<0.000000e+00> : vector<8x1024xf32>
    %12 = tpu.matmul %10, %11, %cst_11 {dimension_numbers = #tpu.dot_dimension_numbers<[1], [1], [0], [0], [0, 0, 1, 0], [], []>} : vector<8x128xbf16>, vector<1024x128xbf16>, vector<8x1024xf32> -> vector<8x1024xf32>
    %c0_i32 = arith.constant 0 : i32
    %13 = arith.cmpi eq, %arg1, %c0_i32 : i32
    %14 = arith.extui %13 : i1 to i32
    %c0_i32_12 = arith.constant 0 : i32
    %15 = arith.cmpi ne, %14, %c0_i32_12 : i32
    scf.if %15 {
      %c0_15 = arith.constant 0 : index
      %c0_16 = arith.constant 0 : index
      %19 = vector.load %arg4[%c0_15, %c0_16] : memref<1x1024xf32, #tpu.memory_space<vmem>>, vector<1x1024xf32>
      %20 = vector.broadcast %19 : vector<1x1024xf32> to vector<8x1024xf32>
      %21 = arith.addf %12, %20 : vector<8x1024xf32>
      %c0_17 = arith.constant 0 : index
      %c0_18 = arith.constant 0 : index
      %22 = vector.load %arg5[%c0_17, %c0_18] : memref<8x1024xf32, #tpu.memory_space<vmem>>, vector<8x1024xf32>
      tpu.vector_store %arg5[%c0_17, %c0_18], %21 {strides = array<i32>} : memref<8x1024xf32, #tpu.memory_space<vmem>>, vector<8x1024xf32>,
    } else {
    }
    %c0_i32_13 = arith.constant 0 : i32
    %16 = arith.cmpi ne, %arg1, %c0_i32_13 : i32
    %17 = arith.extui %16 : i1 to i32
    %c0_i32_14 = arith.constant 0 : i32
    %18 = arith.cmpi ne, %17, %c0_i32_14 : i32
    scf.if %18 {
      %c0_15 = arith.constant 0 : index
      %c0_16 = arith.constant 0 : index
      %19 = vector.load %arg5[%c0_15, %c0_16] : memref<8x1024xf32, #tpu.memory_space<vmem>>, vector<8x1024xf32>
      %20 = arith.addf %19, %12 : vector<8x1024xf32>
      %c0_17 = arith.constant 0 : index
      %c0_18 = arith.constant 0 : index
      %21 = vector.load %arg5[%c0_17, %c0_18] : memref<8x1024xf32, #tpu.memory_space<vmem>>, vector<8x1024xf32>
      tpu.vector_store %arg5[%c0_17, %c0_18], %20 {strides = array<i32>} : memref<8x1024xf32, #tpu.memory_space<vmem>>, vector<8x1024xf32>,
    } else {
    }
    return
  }
  func.func @transform_0(%arg0: i32, %arg1: i32) -> (i32, i32) {
    %c0_i32 = arith.constant 0 : i32
    %c0_i32_0 = arith.constant 0 : i32
    return %arg0, %c0_i32 : i32, i32
  }
  func.func @transform_1(%arg0: i32, %arg1: i32) -> (i32, i32) {
    %c0_i32 = arith.constant 0 : i32
    %c0_i32_0 = arith.constant 0 : i32
    %c0_i32_1 = arith.constant 0 : i32
    return %c0_i32, %c0_i32_0 : i32, i32
  }
  func.func @transform_2(%arg0: i32, %arg1: i32) -> (i32, i32) {
    %c0_i32 = arith.constant 0 : i32
    %c0_i32_0 = arith.constant 0 : i32
    %c0_i32_1 = arith.constant 0 : i32
    return %c0_i32, %c0_i32_0 : i32, i32
  }
  func.func @transform_3(%arg0: i32, %arg1: i32) -> (i32, i32) {
    %c0_i32 = arith.constant 0 : i32
    %c0_i32_0 = arith.constant 0 : i32
    return %arg0, %c0_i32 : i32, i32
  }
  func.func @transform_4(%arg0: i32, %arg1: i32) -> (i32, i32) {
    %c0_i32 = arith.constant 0 : i32
    return %arg0, %arg1 : i32, i32
  }
  func.func @transform_5(%arg0: i32, %arg1: i32) -> (i32, i32) {
    %c0_i32 = arith.constant 0 : i32
    return %arg0, %arg1 : i32, i32
  }
}

</mosaic_0001>

<llo_original>
// kernel: tpu_custom_call.1
$region0: #{tpu_custom_call.1}
  #allocation0 [shape = 'u32[]', space=smem, size = 0x4, offset = 0x4, fixed_abs, tag = 'smem constant byte address 0x4 - core index']
  #allocation1 [shape = 'u32[144,128]{1,0:T(1,128)}', space=vmem, size = 0x12000, scoped, tag = 'internal scratch']
  %s0 = inlined_call_operand.hbm [shape: f32[8,1024], index: 0, kind: input, shape index: {}]
  %s1 = inlined_call_operand.hbm [shape: bf16[1024,128], index: 1, kind: input, shape index: {}]
  %s2 = inlined_call_operand.hbm [shape: f32[1,1024], index: 2, kind: input, shape index: {}]
  %s3 = inlined_call_operand.hbm [shape: f32[8,1024], index: 3, kind: output, shape index: {0}]
  %s4 = inlined_call_operand.hbm [shape: f32[8,128], index: 4, kind: output, shape index: {1}]
  %s5 = inlined_call_operand.hbm [shape: f32[8,128], index: 5, kind: output, shape index: {2}]
  %6 = xla_tuple %s3, %s4, %s5
  %s7 = sld [smem:[#allocation0]]
  $region58: #{tpu_custom_call.1} parent=0
    _
  %s9 = ssub.s32 1, %s7
  %s10 = scalar_select 0, %s9, %s7
  $region1: #{tpu_custom_call.1} parent=0
    #allocation2 [shape = 'u8[32768]{0}', space=vmem, size = 0x8000, scoped, tag = 'input window, operand 0, single buffered']
    #allocation3 [shape = 's32[1]{0}', space=sflag, size = 0x4, scoped, tag = 'scoped memory for tpu_custom_call.1']
    #allocation4 [shape = 's32[1]{0}', space=sflag, size = 0x4, scoped, tag = 'scoped memory for tpu_custom_call.1']
    #allocation5 [shape = 'u8[262144]{0}', space=vmem, size = 0x40000, scoped, tag = 'input window, operand 1, single buffered']
    #allocation6 [shape = 's32[1]{0}', space=sflag, size = 0x4, scoped, tag = 'scoped memory for tpu_custom_call.1']
    #allocation7 [shape = 'u8[4096]{0}', space=vmem, size = 0x1000, scoped, tag = 'input window, operand 2, single buffered']
    #allocation8 [shape = 'u8[32768]{0}', space=vmem, size = 0x8000, scoped, tag = 'output window, operand 0, single buffered']
    #allocation9 [shape = 'u8[4096]{0}', space=vmem, size = 0x1000, scoped, tag = 'output window, operand 1, single buffered']
    #allocation10 [shape = 's32[1]{0}', space=sflag, size = 0x4, scoped, tag = 'scoped memory for tpu_custom_call.1']
    #allocation11 [shape = 'u8[4096]{0}', space=vmem, size = 0x1000, scoped, tag = 'output window, operand 2, single buffered']
    %11 = vsyncpa [#allocation3], 0
    %12 = vsyncpa [#allocation6], 0
    %13 = vsyncpa [#allocation4], 0
    %14 = vsyncpa [#allocation10], 0
    // Predicated region
    $region2: #{tpu_custom_call.1} parent=1 // pred_check
      _
    $region3: #{tpu_custom_call.1} parent=1 // pred_check_branch
      %16 = sbr.rel (0) target = $region5
    $region4: #{tpu_custom_call.1} parent=1 // pred_region
      %s18 = ssub.s32 1024, 1024
      %19 = vsyncadd [#allocation3], %s18
      %s21 = sshll.u32 [#allocation2], 4
      %s22 = int_to_ptr.vmem [resolvable:$true] %s21
      %24 = dma.hbm_to_vmem [thread:$0]  %s0, 1024, %s22, [#allocation3]
    $region5: #{tpu_custom_call.1} parent=1 // pred_fallthru
      _
    // Predicated region
    $region6: #{tpu_custom_call.1} parent=1 // pred_check
      _
    $region7: #{tpu_custom_call.1} parent=1 // pred_check_branch
      %26 = sbr.rel (0) target = $region9
    $region8: #{tpu_custom_call.1} parent=1 // pred_region
      %s28 = ssub.s32 8192, 8192
      %29 = vsyncadd [#allocation6], %s28
      %s30 = sshll.u32 [#allocation5], 4
      %s31 = int_to_ptr.vmem [resolvable:$true] %s30
      %36 = dma.hbm_to_vmem [thread:$0]  %s1, 8192, %s31, [#allocation6], 64, 64, 4
    $region9: #{tpu_custom_call.1} parent=1 // pred_fallthru
      _
    // Predicated region
    $region10: #{tpu_custom_call.1} parent=1 // pred_check
      _
    $region11: #{tpu_custom_call.1} parent=1 // pred_check_branch
      %38 = sbr.rel (0) target = $region13
    $region12: #{tpu_custom_call.1} parent=1 // pred_region
      %s40 = ssub.s32 128, 128
      %41 = vsyncadd [#allocation6], %s40
      %s43 = sshll.u32 [#allocation7], 4
      %s44 = int_to_ptr.vmem [resolvable:$true] %s43
      %46 = dma.hbm_to_vmem [thread:$0]  %s2, 128, %s44, [#allocation6]
    $region13: #{tpu_custom_call.1} parent=1 // pred_fallthru
      _
    // Predicated region
    $region14: #{tpu_custom_call.1} parent=1 // pred_check
      _
    $region15: #{tpu_custom_call.1} parent=1 // pred_check_branch
      %48 = sbr.rel (0) target = $region17
    $region16: #{tpu_custom_call.1} parent=1 // pred_region
      %49 = dma.done [#allocation3], 1024
    $region17: #{tpu_custom_call.1} parent=1 // pred_fallthru
      _
    // Predicated region
    $region18: #{tpu_custom_call.1} parent=1 // pred_check
      _
    $region19: #{tpu_custom_call.1} parent=1 // pred_check_branch
      %51 = sbr.rel (0) target = $region21
    $region20: #{tpu_custom_call.1} parent=1 // pred_region
      %52 = dma.done [#allocation6], 8192
    $region21: #{tpu_custom_call.1} parent=1 // pred_fallthru
      _
    // Predicated region
    $region22: #{tpu_custom_call.1} parent=1 // pred_check
      _
    $region23: #{tpu_custom_call.1} parent=1 // pred_check_branch
      %54 = sbr.rel (0) target = $region25
    $region24: #{tpu_custom_call.1} parent=1 // pred_region
      %55 = dma.done [#allocation6], 128
    $region25: #{tpu_custom_call.1} parent=1 // pred_fallthru
      _
    %v57 = vld [vmem:[#allocation2] sm:$0xff]
    %v58 = vld [vmem:[#allocation2 + $0x8] sm:$0xff]
    %v59 = vld [vmem:[#allocation2 + $0x10] sm:$0xff]
    %v60 = vld [vmem:[#allocation2 + $0x18] sm:$0xff]
    %v61 = vld [vmem:[#allocation2 + $0x20] sm:$0xff]
    %v62 = vld [vmem:[#allocation2 + $0x28] sm:$0xff]
    %v63 = vld [vmem:[#allocation2 + $0x30] sm:$0xff]
    %v64 = vld [vmem:[#allocation2 + $0x38] sm:$0xff]
    %v65 = vpack.c.bf16 %v57, %v57
    %v66 = vpack.c.bf16 %v58, %v58
    %v67 = vpack.c.bf16 %v59, %v59
    %v68 = vpack.c.bf16 %v60, %v60
    %v69 = vpack.c.bf16 %v61, %v61
    %v70 = vpack.c.bf16 %v62, %v62
    %v71 = vpack.c.bf16 %v63, %v63
    %v72 = vpack.c.bf16 %v64, %v64
    %v73 = vld [vmem:[#allocation5] sm:$0xf]
    %v74 = vld [vmem:[#allocation5 + $0x4] sm:$0xf]
    %v75 = vld [vmem:[#allocation5 + $0x8] sm:$0xf]
    %v76 = vld [vmem:[#allocation5 + $0xc] sm:$0xf]
    %v77 = vld [vmem:[#allocation5 + $0x10] sm:$0xf]
    %v78 = vld [vmem:[#allocation5 + $0x14] sm:$0xf]
    %v79 = vld [vmem:[#allocation5 + $0x18] sm:$0xf]
    %v80 = vld [vmem:[#allocation5 + $0x1c] sm:$0xf]
    %v81 = vld [vmem:[#allocation5 + $0x20] sm:$0xf]
    %v82 = vld [vmem:[#allocation5 + $0x24] sm:$0xf]
    %v83 = vld [vmem:[#allocation5 + $0x28] sm:$0xf]
    %v84 = vld [vmem:[#allocation5 + $0x2c] sm:$0xf]
    %v85 = vld [vmem:[#allocation5 + $0x30] sm:$0xf]
    %v86 = vld [vmem:[#allocation5 + $0x34] sm:$0xf]
    %v87 = vld [vmem:[#allocation5 + $0x38] sm:$0xf]
    %v88 = vld [vmem:[#allocation5 + $0x3c] sm:$0xf]
    %v89 = vld [vmem:[#allocation5 + $0x40] sm:$0xf]
    %v90 = vld [vmem:[#allocation5 + $0x44] sm:$0xf]
    %v91 = vld [vmem:[#allocation5 + $0x48] sm:$0xf]
    %v92 = vld [vmem:[#allocation5 + $0x4c] sm:$0xf]
    %v93 = vld [vmem:[#allocation5 + $0x50] sm:$0xf]
    %v94 = vld [vmem:[#allocation5 + $0x54] sm:$0xf]
    %v95 = vld [vmem:[#allocation5 + $0x58] sm:$0xf]
    %v96 = vld [vmem:[#allocation5 + $0x5c] sm:$0xf]
    %v97 = vld [vmem:[#allocation5 + $0x60] sm:$0xf]
    %v98 = vld [vmem:[#allocation5 + $0x64] sm:$0xf]
    %v99 = vld [vmem:[#allocation5 + $0x68] sm:$0xf]
    %v100 = vld [vmem:[#allocation5 + $0x6c] sm:$0xf]
    %v101 = vld [vmem:[#allocation5 + $0x70] sm:$0xf]
    %v102 = vld [vmem:[#allocation5 + $0x74] sm:$0xf]
    %v103 = vld [vmem:[#allocation5 + $0x78] sm:$0xf]
    %v104 = vld [vmem:[#allocation5 + $0x7c] sm:$0xf]
    %v105 = vld [vmem:[#allocation5 + $0x80] sm:$0xf]
    %v106 = vld [vmem:[#allocation5 + $0x84] sm:$0xf]
    %v107 = vld [vmem:[#allocation5 + $0x88] sm:$0xf]
    %v108 = vld [vmem:[#allocation5 + $0x8c] sm:$0xf]
    %v109 = vld [vmem:[#allocation5 + $0x90] sm:$0xf]
    %v110 = vld [vmem:[#allocation5 + $0x94] sm:$0xf]
    %v111 = vld [vmem:[#allocation5 + $0x98] sm:$0xf]
    %v112 = vld [vmem:[#allocation5 + $0x9c] sm:$0xf]
    %v113 = vld [vmem:[#allocation5 + $0xa0] sm:$0xf]
    %v114 = vld [vmem:[#allocation5 + $0xa4] sm:$0xf]
    %v115 = vld [vmem:[#allocation5 + $0xa8] sm:$0xf]
    %v116 = vld [vmem:[#allocation5 + $0xac] sm:$0xf]
    %v117 = vld [vmem:[#allocation5 + $0xb0] sm:$0xf]
    %v118 = vld [vmem:[#allocation5 + $0xb4] sm:$0xf]
    %v119 = vld [vmem:[#allocation5 + $0xb8] sm:$0xf]
    %v120 = vld [vmem:[#allocation5 + $0xbc] sm:$0xf]
    %v121 = vld [vmem:[#allocation5 + $0xc0] sm:$0xf]
    %v122 = vld [vmem:[#allocation5 + $0xc4] sm:$0xf]
    %v123 = vld [vmem:[#allocation5 + $0xc8] sm:$0xf]
    %v124 = vld [vmem:[#allocation5 + $0xcc] sm:$0xf]
    %v125 = vld [vmem:[#allocation5 + $0xd0] sm:$0xf]
    %v126 = vld [vmem:[#allocation5 + $0xd4] sm:$0xf]
    %v127 = vld [vmem:[#allocation5 + $0xd8] sm:$0xf]
    %v128 = vld [vmem:[#allocation5 + $0xdc] sm:$0xf]
    %v129 = vld [vmem:[#allocation5 + $0xe0] sm:$0xf]
    %v130 = vld [vmem:[#allocation5 + $0xe4] sm:$0xf]
    %v131 = vld [vmem:[#allocation5 + $0xe8] sm:$0xf]
    %v132 = vld [vmem:[#allocation5 + $0xec] sm:$0xf]
    %v133 = vld [vmem:[#allocation5 + $0xf0] sm:$0xf]
    %v134 = vld [vmem:[#allocation5 + $0xf4] sm:$0xf]
    %v135 = vld [vmem:[#allocation5 + $0xf8] sm:$0xf]
    %v136 = vld [vmem:[#allocation5 + $0xfc] sm:$0xf]
    %v137 = vld [vmem:[#allocation5 + $0x100] sm:$0xf]
    %v138 = vld [vmem:[#allocation5 + $0x104] sm:$0xf]
    %v139 = vld [vmem:[#allocation5 + $0x108] sm:$0xf]
    %v140 = vld [vmem:[#allocation5 + $0x10c] sm:$0xf]
    %v141 = vld [vmem:[#allocation5 + $0x110] sm:$0xf]
    %v142 = vld [vmem:[#allocation5 + $0x114] sm:$0xf]
    %v143 = vld [vmem:[#allocation5 + $0x118] sm:$0xf]
    %v144 = vld [vmem:[#allocation5 + $0x11c] sm:$0xf]
    %v145 = vld [vmem:[#allocation5 + $0x120] sm:$0xf]
    %v146 = vld [vmem:[#allocation5 + $0x124] sm:$0xf]
    %v147 = vld [vmem:[#allocation5 + $0x128] sm:$0xf]
    %v148 = vld [vmem:[#allocation5 + $0x12c] sm:$0xf]
    %v149 = vld [vmem:[#allocation5 + $0x130] sm:$0xf]
    %v150 = vld [vmem:[#allocation5 + $0x134] sm:$0xf]
    %v151 = vld [vmem:[#allocation5 + $0x138] sm:$0xf]
    %v152 = vld [vmem:[#allocation5 + $0x13c] sm:$0xf]
    %v153 = vld [vmem:[#allocation5 + $0x140] sm:$0xf]
    %v154 = vld [vmem:[#allocation5 + $0x144] sm:$0xf]
    %v155 = vld [vmem:[#allocation5 + $0x148] sm:$0xf]
    %v156 = vld [vmem:[#allocation5 + $0x14c] sm:$0xf]
    %v157 = vld [vmem:[#allocation5 + $0x150] sm:$0xf]
    %v158 = vld [vmem:[#allocation5 + $0x154] sm:$0xf]
    %v159 = vld [vmem:[#allocation5 + $0x158] sm:$0xf]
    %v160 = vld [vmem:[#allocation5 + $0x15c] sm:$0xf]
    %v161 = vld [vmem:[#allocation5 + $0x160] sm:$0xf]
    %v162 = vld [vmem:[#allocation5 + $0x164] sm:$0xf]
    %v163 = vld [vmem:[#allocation5 + $0x168] sm:$0xf]
    %v164 = vld [vmem:[#allocation5 + $0x16c] sm:$0xf]
    %v165 = vld [vmem:[#allocation5 + $0x170] sm:$0xf]
    %v166 = vld [vmem:[#allocation5 + $0x174] sm:$0xf]
    %v167 = vld [vmem:[#allocation5 + $0x178] sm:$0xf]
    %v168 = vld [vmem:[#allocation5 + $0x17c] sm:$0xf]
    %v169 = vld [vmem:[#allocation5 + $0x180] sm:$0xf]
    %v170 = vld [vmem:[#allocation5 + $0x184] sm:$0xf]
    %v171 = vld [vmem:[#allocation5 + $0x188] sm:$0xf]
    %v172 = vld [vmem:[#allocation5 + $0x18c] sm:$0xf]
    %v173 = vld [vmem:[#allocation5 + $0x190] sm:$0xf]
    %v174 = vld [vmem:[#allocation5 + $0x194] sm:$0xf]
    %v175 = vld [vmem:[#allocation5 + $0x198] sm:$0xf]
    %v176 = vld [vmem:[#allocation5 + $0x19c] sm:$0xf]
    %v177 = vld [vmem:[#allocation5 + $0x1a0] sm:$0xf]
    %v178 = vld [vmem:[#allocation5 + $0x1a4] sm:$0xf]
    %v179 = vld [vmem:[#allocation5 + $0x1a8] sm:$0xf]
    %v180 = vld [vmem:[#allocation5 + $0x1ac] sm:$0xf]
    %v181 = vld [vmem:[#allocation5 + $0x1b0] sm:$0xf]
    %v182 = vld [vmem:[#allocation5 + $0x1b4] sm:$0xf]
    %v183 = vld [vmem:[#allocation5 + $0x1b8] sm:$0xf]
    %v184 = vld [vmem:[#allocation5 + $0x1bc] sm:$0xf]
    %v185 = vld [vmem:[#allocation5 + $0x1c0] sm:$0xf]
    %v186 = vld [vmem:[#allocation5 + $0x1c4] sm:$0xf]
    %v187 = vld [vmem:[#allocation5 + $0x1c8] sm:$0xf]
    %v188 = vld [vmem:[#allocation5 + $0x1cc] sm:$0xf]
    %v189 = vld [vmem:[#allocation5 + $0x1d0] sm:$0xf]
    %v190 = vld [vmem:[#allocation5 + $0x1d4] sm:$0xf]
    %v191 = vld [vmem:[#allocation5 + $0x1d8] sm:$0xf]
    %v192 = vld [vmem:[#allocation5 + $0x1dc] sm:$0xf]
    %v193 = vld [vmem:[#allocation5 + $0x1e0] sm:$0xf]
    %v194 = vld [vmem:[#allocation5 + $0x1e4] sm:$0xf]
    %v195 = vld [vmem:[#allocation5 + $0x1e8] sm:$0xf]
    %v196 = vld [vmem:[#allocation5 + $0x1ec] sm:$0xf]
    %v197 = vld [vmem:[#allocation5 + $0x1f0] sm:$0xf]
    %v198 = vld [vmem:[#allocation5 + $0x1f4] sm:$0xf]
    %v199 = vld [vmem:[#allocation5 + $0x1f8] sm:$0xf]
    %v200 = vld [vmem:[#allocation5 + $0x1fc] sm:$0xf]
    %v329 = vunpack.c.l.b16 %v73
    %v330 = vunpack.c.l.b16 %v74
    %v331 = vunpack.c.l.b16 %v75
    %v332 = vunpack.c.l.b16 %v76
    %v333 = vunpack.c.l.b16 %v77
    %v334 = vunpack.c.l.b16 %v78
    %v335 = vunpack.c.l.b16 %v79
    %v336 = vunpack.c.l.b16 %v80
    %v337 = vunpack.c.l.b16 %v81
    %v338 = vunpack.c.l.b16 %v82
    %v339 = vunpack.c.l.b16 %v83
    %v340 = vunpack.c.l.b16 %v84
    %v341 = vunpack.c.l.b16 %v85
    %v342 = vunpack.c.l.b16 %v86
    %v343 = vunpack.c.l.b16 %v87
    %v344 = vunpack.c.l.b16 %v88
    %v345 = vunpack.c.l.b16 %v89
    %v346 = vunpack.c.l.b16 %v90
    %v347 = vunpack.c.l.b16 %v91
    %v348 = vunpack.c.l.b16 %v92
    %v349 = vunpack.c.l.b16 %v93
    %v350 = vunpack.c.l.b16 %v94
    %v351 = vunpack.c.l.b16 %v95
    %v352 = vunpack.c.l.b16 %v96
    %v353 = vunpack.c.l.b16 %v97
    %v354 = vunpack.c.l.b16 %v98
    %v355 = vunpack.c.l.b16 %v99
    %v356 = vunpack.c.l.b16 %v100
    %v357 = vunpack.c.l.b16 %v101
    %v358 = vunpack.c.l.b16 %v102
    %v359 = vunpack.c.l.b16 %v103
    %v360 = vunpack.c.l.b16 %v104
    %v361 = vunpack.c.l.b16 %v105
    %v362 = vunpack.c.l.b16 %v106
    %v363 = vunpack.c.l.b16 %v107
    %v364 = vunpack.c.l.b16 %v108
    %v365 = vunpack.c.l.b16 %v109
    %v366 = vunpack.c.l.b16 %v110
    %v367 = vunpack.c.l.b16 %v111
    %v368 = vunpack.c.l.b16 %v112
    %v369 = vunpack.c.l.b16 %v113
    %v370 = vunpack.c.l.b16 %v114
    %v371 = vunpack.c.l.b16 %v115
    %v372 = vunpack.c.l.b16 %v116
    %v373 = vunpack.c.l.b16 %v117
    %v374 = vunpack.c.l.b16 %v118
    %v375 = vunpack.c.l.b16 %v119
    %v376 = vunpack.c.l.b16 %v120
    %v377 = vunpack.c.l.b16 %v121
    %v378 = vunpack.c.l.b16 %v122
    %v379 = vunpack.c.l.b16 %v123
    %v380 = vunpack.c.l.b16 %v124
    %v381 = vunpack.c.l.b16 %v125
    %v382 = vunpack.c.l.b16 %v126
    %v383 = vunpack.c.l.b16 %v127
    %v384 = vunpack.c.l.b16 %v128
    %v385 = vunpack.c.l.b16 %v129
    %v386 = vunpack.c.l.b16 %v130
    %v387 = vunpack.c.l.b16 %v131
    %v388 = vunpack.c.l.b16 %v132
    %v389 = vunpack.c.l.b16 %v133
    %v390 = vunpack.c.l.b16 %v134
    %v391 = vunpack.c.l.b16 %v135
    %v392 = vunpack.c.l.b16 %v136
    %v393 = vunpack.c.l.b16 %v137
    %v394 = vunpack.c.l.b16 %v138
    %v395 = vunpack.c.l.b16 %v139
    %v396 = vunpack.c.l.b16 %v140
    %v397 = vunpack.c.l.b16 %v141
    %v398 = vunpack.c.l.b16 %v142
    %v399 = vunpack.c.l.b16 %v143
    %v400 = vunpack.c.l.b16 %v144
    %v401 = vunpack.c.l.b16 %v145
    %v402 = vunpack.c.l.b16 %v146
    %v403 = vunpack.c.l.b16 %v147
    %v404 = vunpack.c.l.b16 %v148
    %v405 = vunpack.c.l.b16 %v149
    %v406 = vunpack.c.l.b16 %v150
    %v407 = vunpack.c.l.b16 %v151
    %v408 = vunpack.c.l.b16 %v152
    %v409 = vunpack.c.l.b16 %v153
    %v410 = vunpack.c.l.b16 %v154
    %v411 = vunpack.c.l.b16 %v155
    %v412 = vunpack.c.l.b16 %v156
    %v413 = vunpack.c.l.b16 %v157
    %v414 = vunpack.c.l.b16 %v158
    %v415 = vunpack.c.l.b16 %v159
    %v416 = vunpack.c.l.b16 %v160
    %v417 = vunpack.c.l.b16 %v161
    %v418 = vunpack.c.l.b16 %v162
    %v419 = vunpack.c.l.b16 %v163
    %v420 = vunpack.c.l.b16 %v164
    %v421 = vunpack.c.l.b16 %v165
    %v422 = vunpack.c.l.b16 %v166
    %v423 = vunpack.c.l.b16 %v167
    %v424 = vunpack.c.l.b16 %v168
    %v425 = vunpack.c.l.b16 %v169
    %v426 = vunpack.c.l.b16 %v170
    %v427 = vunpack.c.l.b16 %v171
    %v428 = vunpack.c.l.b16 %v172
    %v429 = vunpack.c.l.b16 %v173
    %v430 = vunpack.c.l.b16 %v174
    %v431 = vunpack.c.l.b16 %v175
    %v432 = vunpack.c.l.b16 %v176
    %v433 = vunpack.c.l.b16 %v177
    %v434 = vunpack.c.l.b16 %v178
    %v435 = vunpack.c.l.b16 %v179
    %v436 = vunpack.c.l.b16 %v180
    %v437 = vunpack.c.l.b16 %v181
    %v438 = vunpack.c.l.b16 %v182
    %v439 = vunpack.c.l.b16 %v183
    %v440 = vunpack.c.l.b16 %v184
    %v441 = vunpack.c.l.b16 %v185
    %v442 = vunpack.c.l.b16 %v186
    %v443 = vunpack.c.l.b16 %v187
    %v444 = vunpack.c.l.b16 %v188
    %v445 = vunpack.c.l.b16 %v189
    %v446 = vunpack.c.l.b16 %v190
    %v447 = vunpack.c.l.b16 %v191
    %v448 = vunpack.c.l.b16 %v192
    %v449 = vunpack.c.l.b16 %v193
    %v450 = vunpack.c.l.b16 %v194
    %v451 = vunpack.c.l.b16 %v195
    %v452 = vunpack.c.l.b16 %v196
    %v453 = vunpack.c.l.b16 %v197
    %v454 = vunpack.c.l.b16 %v198
    %v455 = vunpack.c.l.b16 %v199
    %v456 = vunpack.c.l.b16 %v200
    %v457 = vpack.c.b16 %v330, %v329
    %v458 = vpack.c.b16 %v332, %v331
    %v459 = vpack.c.b16 %v334, %v333
    %v460 = vpack.c.b16 %v336, %v335
    %v461 = vpack.c.b16 %v338, %v337
    %v462 = vpack.c.b16 %v340, %v339
    %v463 = vpack.c.b16 %v342, %v341
    %v464 = vpack.c.b16 %v344, %v343
    %v465 = vpack.c.b16 %v346, %v345
    %v466 = vpack.c.b16 %v348, %v347
    %v467 = vpack.c.b16 %v350, %v349
    %v468 = vpack.c.b16 %v352, %v351
    %v469 = vpack.c.b16 %v354, %v353
    %v470 = vpack.c.b16 %v356, %v355
    %v471 = vpack.c.b16 %v358, %v357
    %v472 = vpack.c.b16 %v360, %v359
    %v473 = vpack.c.b16 %v362, %v361
    %v474 = vpack.c.b16 %v364, %v363
    %v475 = vpack.c.b16 %v366, %v365
    %v476 = vpack.c.b16 %v368, %v367
    %v477 = vpack.c.b16 %v370, %v369
    %v478 = vpack.c.b16 %v372, %v371
    %v479 = vpack.c.b16 %v374, %v373
    %v480 = vpack.c.b16 %v376, %v375
    %v481 = vpack.c.b16 %v378, %v377
    %v482 = vpack.c.b16 %v380, %v379
    %v483 = vpack.c.b16 %v382, %v381
    %v484 = vpack.c.b16 %v384, %v383
    %v485 = vpack.c.b16 %v386, %v385
    %v486 = vpack.c.b16 %v388, %v387
    %v487 = vpack.c.b16 %v390, %v389
    %v488 = vpack.c.b16 %v392, %v391
    %v489 = vpack.c.b16 %v394, %v393
    %v490 = vpack.c.b16 %v396, %v395
    %v491 = vpack.c.b16 %v398, %v397
    %v492 = vpack.c.b16 %v400, %v399
    %v493 = vpack.c.b16 %v402, %v401
    %v494 = vpack.c.b16 %v404, %v403
    %v495 = vpack.c.b16 %v406, %v405
    %v496 = vpack.c.b16 %v408, %v407
    %v497 = vpack.c.b16 %v410, %v409
    %v498 = vpack.c.b16 %v412, %v411
    %v499 = vpack.c.b16 %v414, %v413
    %v500 = vpack.c.b16 %v416, %v415
    %v501 = vpack.c.b16 %v418, %v417
    %v502 = vpack.c.b16 %v420, %v419
    %v503 = vpack.c.b16 %v422, %v421
    %v504 = vpack.c.b16 %v424, %v423
    %v505 = vpack.c.b16 %v426, %v425
    %v506 = vpack.c.b16 %v428, %v427
    %v507 = vpack.c.b16 %v430, %v429
    %v508 = vpack.c.b16 %v432, %v431
    %v509 = vpack.c.b16 %v434, %v433
    %v510 = vpack.c.b16 %v436, %v435
    %v511 = vpack.c.b16 %v438, %v437
    %v512 = vpack.c.b16 %v440, %v439
    %v513 = vpack.c.b16 %v442, %v441
    %v514 = vpack.c.b16 %v444, %v443
    %v515 = vpack.c.b16 %v446, %v445
    %v516 = vpack.c.b16 %v448, %v447
    %v517 = vpack.c.b16 %v450, %v449
    %v518 = vpack.c.b16 %v452, %v451
    %v519 = vpack.c.b16 %v454, %v453
    %v520 = vpack.c.b16 %v456, %v455
    %585 = vmatprep.subr.bf16.mxu0 0
    %586 = vmatpush1.bf16.msra.mxu0 %v457
    %587 = vmatprep.subr.bf16.mxu0 0
    %588 = vmatpush1.bf16.msra.mxu0 %v458
    %589 = vmatprep.subr.bf16.mxu0 0
    %590 = vmatpush1.bf16.msra.mxu0 %v459
    %591 = vmatprep.subr.bf16.mxu0 0
    %592 = vmatpush1.bf16.msra.mxu0 %v460
    %593 = vmatprep.subr.bf16.mxu0 0
    %594 = vmatpush1.bf16.msra.mxu0 %v461
    %595 = vmatprep.subr.bf16.mxu0 0
    %596 = vmatpush1.bf16.msra.mxu0 %v462
    %597 = vmatprep.subr.bf16.mxu0 0
    %598 = vmatpush1.bf16.msra.mxu0 %v463
    %599 = vmatprep.subr.bf16.mxu0 0
    %600 = vmatpush1.bf16.msra.mxu0 %v464
    %601 = vmatprep.subr.bf16.mxu0 0
    %602 = vmatpush1.bf16.msra.mxu0 %v465
    %603 = vmatprep.subr.bf16.mxu0 0
    %604 = vmatpush1.bf16.msra.mxu0 %v466
    %605 = vmatprep.subr.bf16.mxu0 0
    %606 = vmatpush1.bf16.msra.mxu0 %v467
    %607 = vmatprep.subr.bf16.mxu0 0
    %608 = vmatpush1.bf16.msra.mxu0 %v468
    %609 = vmatprep.subr.bf16.mxu0 0
    %610 = vmatpush1.bf16.msra.mxu0 %v469
    %611 = vmatprep.subr.bf16.mxu0 0
    %612 = vmatpush1.bf16.msra.mxu0 %v470
    %613 = vmatprep.subr.bf16.mxu0 0
    %614 = vmatpush1.bf16.msra.mxu0 %v471
    %615 = vmatprep.subr.bf16.mxu0 0
    %616 = vmatpush1.bf16.msra.mxu0 %v472
    %617 = vmatprep.mubr.bf16.mxu0 %v66
    %618 = vmatmul.mubr.bf16.gmra.mrb[0].mxu0 %v65
    %v619 = vpop.f32.mrb[0].mxu0
    %v620 = vadd.f32 0.0, %v619
    %v621 = vpop.f32.mrb[0].mxu0
    %v622 = vpop.f32.mrb[0].mxu0
    %v623 = vpop.f32.mrb[0].mxu0
    %624 = vdwg.mxu0
    %625 = vmatprep.subr.bf16.mxu0 0
    %626 = vmatpush1.bf16.msra.mxu0 %v473
    %627 = vmatprep.subr.bf16.mxu0 0
    %628 = vmatpush1.bf16.msra.mxu0 %v474
    %629 = vmatprep.subr.bf16.mxu0 0
    %630 = vmatpush1.bf16.msra.mxu0 %v475
    %631 = vmatprep.subr.bf16.mxu0 0
    %632 = vmatpush1.bf16.msra.mxu0 %v476
    %633 = vmatprep.subr.bf16.mxu0 0
    %634 = vmatpush1.bf16.msra.mxu0 %v477
    %635 = vmatprep.subr.bf16.mxu0 0
    %636 = vmatpush1.bf16.msra.mxu0 %v478
    %637 = vmatprep.subr.bf16.mxu0 0
    %638 = vmatpush1.bf16.msra.mxu0 %v479
    %639 = vmatprep.subr.bf16.mxu0 0
    %640 = vmatpush1.bf16.msra.mxu0 %v480
    %641 = vmatprep.subr.bf16.mxu0 0
    %642 = vmatpush1.bf16.msra.mxu0 %v481
    %643 = vmatprep.subr.bf16.mxu0 0
    %644 = vmatpush1.bf16.msra.mxu0 %v482
    %645 = vmatprep.subr.bf16.mxu0 0
    %646 = vmatpush1.bf16.msra.mxu0 %v483
    %647 = vmatprep.subr.bf16.mxu0 0
    %648 = vmatpush1.bf16.msra.mxu0 %v484
    %649 = vmatprep.subr.bf16.mxu0 0
    %650 = vmatpush1.bf16.msra.mxu0 %v485
    %651 = vmatprep.subr.bf16.mxu0 0
    %652 = vmatpush1.bf16.msra.mxu0 %v486
    %653 = vmatprep.subr.bf16.mxu0 0
    %654 = vmatpush1.bf16.msra.mxu0 %v487
    %655 = vmatprep.subr.bf16.mxu0 0
    %656 = vmatpush1.bf16.msra.mxu0 %v488
    %657 = vmatprep.mubr.bf16.mxu0 %v68
    %658 = vmatmul.mubr.bf16.gmra.mrb[0].mxu0 %v67
    %v659 = vpop.f32.mrb[0].mxu0
    %v660 = vadd.f32 %v620, %v659
    %v661 = vpop.f32.mrb[0].mxu0
    %v662 = vpop.f32.mrb[0].mxu0
    %v663 = vpop.f32.mrb[0].mxu0
    %664 = vdwg.mxu0
    %665 = vmatprep.subr.bf16.mxu0 0
    %666 = vmatpush1.bf16.msra.mxu0 %v489
    %667 = vmatprep.subr.bf16.mxu0 0
    %668 = vmatpush1.bf16.msra.mxu0 %v490
    %669 = vmatprep.subr.bf16.mxu0 0
    %670 = vmatpush1.bf16.msra.mxu0 %v491
    %671 = vmatprep.subr.bf16.mxu0 0
    %672 = vmatpush1.bf16.msra.mxu0 %v492
    %673 = vmatprep.subr.bf16.mxu0 0
    %674 = vmatpush1.bf16.msra.mxu0 %v493
    %675 = vmatprep.subr.bf16.mxu0 0
    %676 = vmatpush1.bf16.msra.mxu0 %v494
    %677 = vmatprep.subr.bf16.mxu0 0
    %678 = vmatpush1.bf16.msra.mxu0 %v495
    %679 = vmatprep.subr.bf16.mxu0 0
    %680 = vmatpush1.bf16.msra.mxu0 %v496
    %681 = vmatprep.subr.bf16.mxu0 0
    %682 = vmatpush1.bf16.msra.mxu0 %v497
    %683 = vmatprep.subr.bf16.mxu0 0
    %684 = vmatpush1.bf16.msra.mxu0 %v498
    %685 = vmatprep.subr.bf16.mxu0 0
    %686 = vmatpush1.bf16.msra.mxu0 %v499
    %687 = vmatprep.subr.bf16.mxu0 0
    %688 = vmatpush1.bf16.msra.mxu0 %v500
    %689 = vmatprep.subr.bf16.mxu0 0
    %690 = vmatpush1.bf16.msra.mxu0 %v501
    %691 = vmatprep.subr.bf16.mxu0 0
    %692 = vmatpush1.bf16.msra.mxu0 %v502
    %693 = vmatprep.subr.bf16.mxu0 0
    %694 = vmatpush1.bf16.msra.mxu0 %v503
    %695 = vmatprep.subr.bf16.mxu0 0
    %696 = vmatpush1.bf16.msra.mxu0 %v504
    %697 = vmatprep.mubr.bf16.mxu0 %v70
    %698 = vmatmul.mubr.bf16.gmra.mrb[0].mxu0 %v69
    %v699 = vpop.f32.mrb[0].mxu0
    %v700 = vadd.f32 %v660, %v699
    %v701 = vpop.f32.mrb[0].mxu0
    %v702 = vpop.f32.mrb[0].mxu0
    %v703 = vpop.f32.mrb[0].mxu0
    %704 = vdwg.mxu0
    %705 = vmatprep.subr.bf16.mxu0 0
    %706 = vmatpush1.bf16.msra.mxu0 %v505
    %707 = vmatprep.subr.bf16.mxu0 0
    %708 = vmatpush1.bf16.msra.mxu0 %v506
    %709 = vmatprep.subr.bf16.mxu0 0
    %710 = vmatpush1.bf16.msra.mxu0 %v507
    %711 = vmatprep.subr.bf16.mxu0 0
    %712 = vmatpush1.bf16.msra.mxu0 %v508
    %713 = vmatprep.subr.bf16.mxu0 0
    %714 = vmatpush1.bf16.msra.mxu0 %v509
    %715 = vmatprep.subr.bf16.mxu0 0
    %716 = vmatpush1.bf16.msra.mxu0 %v510
    %717 = vmatprep.subr.bf16.mxu0 0
    %718 = vmatpush1.bf16.msra.mxu0 %v511
    %719 = vmatprep.subr.bf16.mxu0 0
    %720 = vmatpush1.bf16.msra.mxu0 %v512
    %721 = vmatprep.subr.bf16.mxu0 0
    %722 = vmatpush1.bf16.msra.mxu0 %v513
    %723 = vmatprep.subr.bf16.mxu0 0
    %724 = vmatpush1.bf16.msra.mxu0 %v514
    %725 = vmatprep.subr.bf16.mxu0 0
    %726 = vmatpush1.bf16.msra.mxu0 %v515
    %727 = vmatprep.subr.bf16.mxu0 0
    %728 = vmatpush1.bf16.msra.mxu0 %v516
    %729 = vmatprep.subr.bf16.mxu0 0
    %730 = vmatpush1.bf16.msra.mxu0 %v517
    %731 = vmatprep.subr.bf16.mxu0 0
    %732 = vmatpush1.bf16.msra.mxu0 %v518
    %733 = vmatprep.subr.bf16.mxu0 0
    %734 = vmatpush1.bf16.msra.mxu0 %v519
    %735 = vmatprep.subr.bf16.mxu0 0
    %736 = vmatpush1.bf16.msra.mxu0 %v520
    %737 = vmatprep.mubr.bf16.mxu0 %v72
    %738 = vmatmul.mubr.bf16.gmra.mrb[0].mxu0 %v71
    %v739 = vpop.f32.mrb[0].mxu0
    %v740 = vadd.f32 %v700, %v739
    %v741 = vpop.f32.mrb[0].mxu0
    %v742 = vpop.f32.mrb[0].mxu0
    %v743 = vpop.f32.mrb[0].mxu0
    %744 = vdwg.mxu0
    %v745 = vmax.f32 %v740, 0.0
    %746 = vst [vmem:[#allocation9] sm:$0xff] %v745
    %v747 = vadd.f32 %v745, 0.0
    %748 = vst [vmem:[#allocation11] sm:$0xff] %v747
    %v749 = vpack.c.bf16 %v745, %v745
    %v750 = vld [vmem:[#allocation5] sm:$0xf]
    %v751 = vld [vmem:[#allocation5 + $0x4] sm:$0xf]
    %v752 = vld [vmem:[#allocation5 + $0x8] sm:$0xf]
    %v753 = vld [vmem:[#allocation5 + $0xc] sm:$0xf]
    %v754 = vld [vmem:[#allocation5 + $0x10] sm:$0xf]
    %v755 = vld [vmem:[#allocation5 + $0x14] sm:$0xf]
    %v756 = vld [vmem:[#allocation5 + $0x18] sm:$0xf]
    %v757 = vld [vmem:[#allocation5 + $0x1c] sm:$0xf]
    %v758 = vld [vmem:[#allocation5 + $0x20] sm:$0xf]
    %v759 = vld [vmem:[#allocation5 + $0x24] sm:$0xf]
    %v760 = vld [vmem:[#allocation5 + $0x28] sm:$0xf]
    %v761 = vld [vmem:[#allocation5 + $0x2c] sm:$0xf]
    %v762 = vld [vmem:[#allocation5 + $0x30] sm:$0xf]
    %v763 = vld [vmem:[#allocation5 + $0x34] sm:$0xf]
    %v764 = vld [vmem:[#allocation5 + $0x38] sm:$0xf]
    %v765 = vld [vmem:[#allocation5 + $0x3c] sm:$0xf]
    %v766 = vld [vmem:[#allocation5 + $0x40] sm:$0xf]
    %v767 = vld [vmem:[#allocation5 + $0x44] sm:$0xf]
    %v768 = vld [vmem:[#allocation5 + $0x48] sm:$0xf]
    %v769 = vld [vmem:[#allocation5 + $0x4c] sm:$0xf]
    %v770 = vld [vmem:[#allocation5 + $0x50] sm:$0xf]
    %v771 = vld [vmem:[#allocation5 + $0x54] sm:$0xf]
    %v772 = vld [vmem:[#allocation5 + $0x58] sm:$0xf]
    %v773 = vld [vmem:[#allocation5 + $0x5c] sm:$0xf]
    %v774 = vld [vmem:[#allocation5 + $0x60] sm:$0xf]
    %v775 = vld [vmem:[#allocation5 + $0x64] sm:$0xf]
    %v776 = vld [vmem:[#allocation5 + $0x68] sm:$0xf]
    %v777 = vld [vmem:[#allocation5 + $0x6c] sm:$0xf]
    %v778 = vld [vmem:[#allocation5 + $0x70] sm:$0xf]
    %v779 = vld [vmem:[#allocation5 + $0x74] sm:$0xf]
    %v780 = vld [vmem:[#allocation5 + $0x78] sm:$0xf]
    %v781 = vld [vmem:[#allocation5 + $0x7c] sm:$0xf]
    %v782 = vld [vmem:[#allocation5 + $0x80] sm:$0xf]
    %v783 = vld [vmem:[#allocation5 + $0x84] sm:$0xf]
    %v784 = vld [vmem:[#allocation5 + $0x88] sm:$0xf]
    %v785 = vld [vmem:[#allocation5 + $0x8c] sm:$0xf]
    %v786 = vld [vmem:[#allocation5 + $0x90] sm:$0xf]
    %v787 = vld [vmem:[#allocation5 + $0x94] sm:$0xf]
    %v788 = vld [vmem:[#allocation5 + $0x98] sm:$0xf]
    %v789 = vld [vmem:[#allocation5 + $0x9c] sm:$0xf]
    %v790 = vld [vmem:[#allocation5 + $0xa0] sm:$0xf]
    %v791 = vld [vmem:[#allocation5 + $0xa4] sm:$0xf]
    %v792 = vld [vmem:[#allocation5 + $0xa8] sm:$0xf]
    %v793 = vld [vmem:[#allocation5 + $0xac] sm:$0xf]
    %v794 = vld [vmem:[#allocation5 + $0xb0] sm:$0xf]
    %v795 = vld [vmem:[#allocation5 + $0xb4] sm:$0xf]
    %v796 = vld [vmem:[#allocation5 + $0xb8] sm:$0xf]
    %v797 = vld [vmem:[#allocation5 + $0xbc] sm:$0xf]
    %v798 = vld [vmem:[#allocation5 + $0xc0] sm:$0xf]
    %v799 = vld [vmem:[#allocation5 + $0xc4] sm:$0xf]
    %v800 = vld [vmem:[#allocation5 + $0xc8] sm:$0xf]
    %v801 = vld [vmem:[#allocation5 + $0xcc] sm:$0xf]
    %v802 = vld [vmem:[#allocation5 + $0xd0] sm:$0xf]
    %v803 = vld [vmem:[#allocation5 + $0xd4] sm:$0xf]
    %v804 = vld [vmem:[#allocation5 + $0xd8] sm:$0xf]
    %v805 = vld [vmem:[#allocation5 + $0xdc] sm:$0xf]
    %v806 = vld [vmem:[#allocation5 + $0xe0] sm:$0xf]
    %v807 = vld [vmem:[#allocation5 + $0xe4] sm:$0xf]
    %v808 = vld [vmem:[#allocation5 + $0xe8] sm:$0xf]
    %v809 = vld [vmem:[#allocation5 + $0xec] sm:$0xf]
    %v810 = vld [vmem:[#allocation5 + $0xf0] sm:$0xf]
    %v811 = vld [vmem:[#allocation5 + $0xf4] sm:$0xf]
    %v812 = vld [vmem:[#allocation5 + $0xf8] sm:$0xf]
    %v813 = vld [vmem:[#allocation5 + $0xfc] sm:$0xf]
    %v814 = vld [vmem:[#allocation5 + $0x100] sm:$0xf]
    %v815 = vld [vmem:[#allocation5 + $0x104] sm:$0xf]
    %v816 = vld [vmem:[#allocation5 + $0x108] sm:$0xf]
    %v817 = vld [vmem:[#allocation5 + $0x10c] sm:$0xf]
    %v818 = vld [vmem:[#allocation5 + $0x110] sm:$0xf]
    %v819 = vld [vmem:[#allocation5 + $0x114] sm:$0xf]
    %v820 = vld [vmem:[#allocation5 + $0x118] sm:$0xf]
    %v821 = vld [vmem:[#allocation5 + $0x11c] sm:$0xf]
    %v822 = vld [vmem:[#allocation5 + $0x120] sm:$0xf]
    %v823 = vld [vmem:[#allocation5 + $0x124] sm:$0xf]
    %v824 = vld [vmem:[#allocation5 + $0x128] sm:$0xf]
    %v825 = vld [vmem:[#allocation5 + $0x12c] sm:$0xf]
    %v826 = vld [vmem:[#allocation5 + $0x130] sm:$0xf]
    %v827 = vld [vmem:[#allocation5 + $0x134] sm:$0xf]
    %v828 = vld [vmem:[#allocation5 + $0x138] sm:$0xf]
    %v829 = vld [vmem:[#allocation5 + $0x13c] sm:$0xf]
    %v830 = vld [vmem:[#allocation5 + $0x140] sm:$0xf]
    %v831 = vld [vmem:[#allocation5 + $0x144] sm:$0xf]
    %v832 = vld [vmem:[#allocation5 + $0x148] sm:$0xf]
    %v833 = vld [vmem:[#allocation5 + $0x14c] sm:$0xf]
    %v834 = vld [vmem:[#allocation5 + $0x150] sm:$0xf]
    %v835 = vld [vmem:[#allocation5 + $0x154] sm:$0xf]
    %v836 = vld [vmem:[#allocation5 + $0x158] sm:$0xf]
    %v837 = vld [vmem:[#allocation5 + $0x15c] sm:$0xf]
    %v838 = vld [vmem:[#allocation5 + $0x160] sm:$0xf]
    %v839 = vld [vmem:[#allocation5 + $0x164] sm:$0xf]
    %v840 = vld [vmem:[#allocation5 + $0x168] sm:$0xf]
    %v841 = vld [vmem:[#allocation5 + $0x16c] sm:$0xf]
    %v842 = vld [vmem:[#allocation5 + $0x170] sm:$0xf]
    %v843 = vld [vmem:[#allocation5 + $0x174] sm:$0xf]
    %v844 = vld [vmem:[#allocation5 + $0x178] sm:$0xf]
    %v845 = vld [vmem:[#allocation5 + $0x17c] sm:$0xf]
    %v846 = vld [vmem:[#allocation5 + $0x180] sm:$0xf]
    %v847 = vld [vmem:[#allocation5 + $0x184] sm:$0xf]
    %v848 = vld [vmem:[#allocation5 + $0x188] sm:$0xf]
    %v849 = vld [vmem:[#allocation5 + $0x18c] sm:$0xf]
    %v850 = vld [vmem:[#allocation5 + $0x190] sm:$0xf]
    %v851 = vld [vmem:[#allocation5 + $0x194] sm:$0xf]
    %v852 = vld [vmem:[#allocation5 + $0x198] sm:$0xf]
    %v853 = vld [vmem:[#allocation5 + $0x19c] sm:$0xf]
    %v854 = vld [vmem:[#allocation5 + $0x1a0] sm:$0xf]
    %v855 = vld [vmem:[#allocation5 + $0x1a4] sm:$0xf]
    %v856 = vld [vmem:[#allocation5 + $0x1a8] sm:$0xf]
    %v857 = vld [vmem:[#allocation5 + $0x1ac] sm:$0xf]
    %v858 = vld [vmem:[#allocation5 + $0x1b0] sm:$0xf]
    %v859 = vld [vmem:[#allocation5 + $0x1b4] sm:$0xf]
    %v860 = vld [vmem:[#allocation5 + $0x1b8] sm:$0xf]
    %v861 = vld [vmem:[#allocation5 + $0x1bc] sm:$0xf]
    %v862 = vld [vmem:[#allocation5 + $0x1c0] sm:$0xf]
    %v863 = vld [vmem:[#allocation5 + $0x1c4] sm:$0xf]
    %v864 = vld [vmem:[#allocation5 + $0x1c8] sm:$0xf]
    %v865 = vld [vmem:[#allocation5 + $0x1cc] sm:$0xf]
    %v866 = vld [vmem:[#allocation5 + $0x1d0] sm:$0xf]
    %v867 = vld [vmem:[#allocation5 + $0x1d4] sm:$0xf]
    %v868 = vld [vmem:[#allocation5 + $0x1d8] sm:$0xf]
    %v869 = vld [vmem:[#allocation5 + $0x1dc] sm:$0xf]
    %v870 = vld [vmem:[#allocation5 + $0x1e0] sm:$0xf]
    %v871 = vld [vmem:[#allocation5 + $0x1e4] sm:$0xf]
    %v872 = vld [vmem:[#allocation5 + $0x1e8] sm:$0xf]
    %v873 = vld [vmem:[#allocation5 + $0x1ec] sm:$0xf]
    %v874 = vld [vmem:[#allocation5 + $0x1f0] sm:$0xf]
    %v875 = vld [vmem:[#allocation5 + $0x1f4] sm:$0xf]
    %v876 = vld [vmem:[#allocation5 + $0x1f8] sm:$0xf]
    %v877 = vld [vmem:[#allocation5 + $0x1fc] sm:$0xf]
    %v1006 = vunpack.c.l.b16 %v750
    %v1007 = vunpack.c.l.b16 %v751
    %v1008 = vunpack.c.l.b16 %v752
    %v1009 = vunpack.c.l.b16 %v753
    %v1010 = vunpack.c.l.b16 %v754
    %v1011 = vunpack.c.l.b16 %v755
    %v1012 = vunpack.c.l.b16 %v756
    %v1013 = vunpack.c.l.b16 %v757
    %v1014 = vunpack.c.l.b16 %v758
    %v1015 = vunpack.c.l.b16 %v759
    %v1016 = vunpack.c.l.b16 %v760
    %v1017 = vunpack.c.l.b16 %v761
    %v1018 = vunpack.c.l.b16 %v762
    %v1019 = vunpack.c.l.b16 %v763
    %v1020 = vunpack.c.l.b16 %v764
    %v1021 = vunpack.c.l.b16 %v765
    %v1022 = vunpack.c.l.b16 %v766
    %v1023 = vunpack.c.l.b16 %v767
    %v1024 = vunpack.c.l.b16 %v768
    %v1025 = vunpack.c.l.b16 %v769
    %v1026 = vunpack.c.l.b16 %v770
    %v1027 = vunpack.c.l.b16 %v771
    %v1028 = vunpack.c.l.b16 %v772
    %v1029 = vunpack.c.l.b16 %v773
    %v1030 = vunpack.c.l.b16 %v774
    %v1031 = vunpack.c.l.b16 %v775
    %v1032 = vunpack.c.l.b16 %v776
    %v1033 = vunpack.c.l.b16 %v777
    %v1034 = vunpack.c.l.b16 %v778
    %v1035 = vunpack.c.l.b16 %v779
    %v1036 = vunpack.c.l.b16 %v780
    %v1037 = vunpack.c.l.b16 %v781
    %v1038 = vunpack.c.l.b16 %v782
    %v1039 = vunpack.c.l.b16 %v783
    %v1040 = vunpack.c.l.b16 %v784
    %v1041 = vunpack.c.l.b16 %v785
    %v1042 = vunpack.c.l.b16 %v786
    %v1043 = vunpack.c.l.b16 %v787
    %v1044 = vunpack.c.l.b16 %v788
    %v1045 = vunpack.c.l.b16 %v789
    %v1046 = vunpack.c.l.b16 %v790
    %v1047 = vunpack.c.l.b16 %v791
    %v1048 = vunpack.c.l.b16 %v792
    %v1049 = vunpack.c.l.b16 %v793
    %v1050 = vunpack.c.l.b16 %v794
    %v1051 = vunpack.c.l.b16 %v795
    %v1052 = vunpack.c.l.b16 %v796
    %v1053 = vunpack.c.l.b16 %v797
    %v1054 = vunpack.c.l.b16 %v798
    %v1055 = vunpack.c.l.b16 %v799
    %v1056 = vunpack.c.l.b16 %v800
    %v1057 = vunpack.c.l.b16 %v801
    %v1058 = vunpack.c.l.b16 %v802
    %v1059 = vunpack.c.l.b16 %v803
    %v1060 = vunpack.c.l.b16 %v804
    %v1061 = vunpack.c.l.b16 %v805
    %v1062 = vunpack.c.l.b16 %v806
    %v1063 = vunpack.c.l.b16 %v807
    %v1064 = vunpack.c.l.b16 %v808
    %v1065 = vunpack.c.l.b16 %v809
    %v1066 = vunpack.c.l.b16 %v810
    %v1067 = vunpack.c.l.b16 %v811
    %v1068 = vunpack.c.l.b16 %v812
    %v1069 = vunpack.c.l.b16 %v813
    %v1070 = vunpack.c.l.b16 %v814
    %v1071 = vunpack.c.l.b16 %v815
    %v1072 = vunpack.c.l.b16 %v816
    %v1073 = vunpack.c.l.b16 %v817
    %v1074 = vunpack.c.l.b16 %v818
    %v1075 = vunpack.c.l.b16 %v819
    %v1076 = vunpack.c.l.b16 %v820
    %v1077 = vunpack.c.l.b16 %v821
    %v1078 = vunpack.c.l.b16 %v822
    %v1079 = vunpack.c.l.b16 %v823
    %v1080 = vunpack.c.l.b16 %v824
    %v1081 = vunpack.c.l.b16 %v825
    %v1082 = vunpack.c.l.b16 %v826
    %v1083 = vunpack.c.l.b16 %v827
    %v1084 = vunpack.c.l.b16 %v828
    %v1085 = vunpack.c.l.b16 %v829
    %v1086 = vunpack.c.l.b16 %v830
    %v1087 = vunpack.c.l.b16 %v831
    %v1088 = vunpack.c.l.b16 %v832
    %v1089 = vunpack.c.l.b16 %v833
    %v1090 = vunpack.c.l.b16 %v834
    %v1091 = vunpack.c.l.b16 %v835
    %v1092 = vunpack.c.l.b16 %v836
    %v1093 = vunpack.c.l.b16 %v837
    %v1094 = vunpack.c.l.b16 %v838
    %v1095 = vunpack.c.l.b16 %v839
    %v1096 = vunpack.c.l.b16 %v840
    %v1097 = vunpack.c.l.b16 %v841
    %v1098 = vunpack.c.l.b16 %v842
    %v1099 = vunpack.c.l.b16 %v843
    %v1100 = vunpack.c.l.b16 %v844
    %v1101 = vunpack.c.l.b16 %v845
    %v1102 = vunpack.c.l.b16 %v846
    %v1103 = vunpack.c.l.b16 %v847
    %v1104 = vunpack.c.l.b16 %v848
    %v1105 = vunpack.c.l.b16 %v849
    %v1106 = vunpack.c.l.b16 %v850
    %v1107 = vunpack.c.l.b16 %v851
    %v1108 = vunpack.c.l.b16 %v852
    %v1109 = vunpack.c.l.b16 %v853
    %v1110 = vunpack.c.l.b16 %v854
    %v1111 = vunpack.c.l.b16 %v855
    %v1112 = vunpack.c.l.b16 %v856
    %v1113 = vunpack.c.l.b16 %v857
    %v1114 = vunpack.c.l.b16 %v858
    %v1115 = vunpack.c.l.b16 %v859
    %v1116 = vunpack.c.l.b16 %v860
    %v1117 = vunpack.c.l.b16 %v861
    %v1118 = vunpack.c.l.b16 %v862
    %v1119 = vunpack.c.l.b16 %v863
    %v1120 = vunpack.c.l.b16 %v864
    %v1121 = vunpack.c.l.b16 %v865
    %v1122 = vunpack.c.l.b16 %v866
    %v1123 = vunpack.c.l.b16 %v867
    %v1124 = vunpack.c.l.b16 %v868
    %v1125 = vunpack.c.l.b16 %v869
    %v1126 = vunpack.c.l.b16 %v870
    %v1127 = vunpack.c.l.b16 %v871
    %v1128 = vunpack.c.l.b16 %v872
    %v1129 = vunpack.c.l.b16 %v873
    %v1130 = vunpack.c.l.b16 %v874
    %v1131 = vunpack.c.l.b16 %v875
    %v1132 = vunpack.c.l.b16 %v876
    %v1133 = vunpack.c.l.b16 %v877
    %v1134 = vpack.c.b16 %v1007, %v1006
    %v1135 = vpack.c.b16 %v1009, %v1008
    %v1136 = vpack.c.b16 %v1011, %v1010
    %v1137 = vpack.c.b16 %v1013, %v1012
    %v1138 = vpack.c.b16 %v1015, %v1014
    %v1139 = vpack.c.b16 %v1017, %v1016
    %v1140 = vpack.c.b16 %v1019, %v1018
    %v1141 = vpack.c.b16 %v1021, %v1020
    %v1142 = vpack.c.b16 %v1023, %v1022
    %v1143 = vpack.c.b16 %v1025, %v1024
    %v1144 = vpack.c.b16 %v1027, %v1026
    %v1145 = vpack.c.b16 %v1029, %v1028
    %v1146 = vpack.c.b16 %v1031, %v1030
    %v1147 = vpack.c.b16 %v1033, %v1032
    %v1148 = vpack.c.b16 %v1035, %v1034
    %v1149 = vpack.c.b16 %v1037, %v1036
    %v1150 = vpack.c.b16 %v1039, %v1038
    %v1151 = vpack.c.b16 %v1041, %v1040
    %v1152 = vpack.c.b16 %v1043, %v1042
    %v1153 = vpack.c.b16 %v1045, %v1044
    %v1154 = vpack.c.b16 %v1047, %v1046
    %v1155 = vpack.c.b16 %v1049, %v1048
    %v1156 = vpack.c.b16 %v1051, %v1050
    %v1157 = vpack.c.b16 %v1053, %v1052
    %v1158 = vpack.c.b16 %v1055, %v1054
    %v1159 = vpack.c.b16 %v1057, %v1056
    %v1160 = vpack.c.b16 %v1059, %v1058
    %v1161 = vpack.c.b16 %v1061, %v1060
    %v1162 = vpack.c.b16 %v1063, %v1062
    %v1163 = vpack.c.b16 %v1065, %v1064
    %v1164 = vpack.c.b16 %v1067, %v1066
    %v1165 = vpack.c.b16 %v1069, %v1068
    %v1166 = vpack.c.b16 %v1071, %v1070
    %v1167 = vpack.c.b16 %v1073, %v1072
    %v1168 = vpack.c.b16 %v1075, %v1074
    %v1169 = vpack.c.b16 %v1077, %v1076
    %v1170 = vpack.c.b16 %v1079, %v1078
    %v1171 = vpack.c.b16 %v1081, %v1080
    %v1172 = vpack.c.b16 %v1083, %v1082
    %v1173 = vpack.c.b16 %v1085, %v1084
    %v1174 = vpack.c.b16 %v1087, %v1086
    %v1175 = vpack.c.b16 %v1089, %v1088
    %v1176 = vpack.c.b16 %v1091, %v1090
    %v1177 = vpack.c.b16 %v1093, %v1092
    %v1178 = vpack.c.b16 %v1095, %v1094
    %v1179 = vpack.c.b16 %v1097, %v1096
    %v1180 = vpack.c.b16 %v1099, %v1098
    %v1181 = vpack.c.b16 %v1101, %v1100
    %v1182 = vpack.c.b16 %v1103, %v1102
    %v1183 = vpack.c.b16 %v1105, %v1104
    %v1184 = vpack.c.b16 %v1107, %v1106
    %v1185 = vpack.c.b16 %v1109, %v1108
    %v1186 = vpack.c.b16 %v1111, %v1110
    %v1187 = vpack.c.b16 %v1113, %v1112
    %v1188 = vpack.c.b16 %v1115, %v1114
    %v1189 = vpack.c.b16 %v1117, %v1116
    %v1190 = vpack.c.b16 %v1119, %v1118
    %v1191 = vpack.c.b16 %v1121, %v1120
    %v1192 = vpack.c.b16 %v1123, %v1122
    %v1193 = vpack.c.b16 %v1125, %v1124
    %v1194 = vpack.c.b16 %v1127, %v1126
    %v1195 = vpack.c.b16 %v1129, %v1128
    %v1196 = vpack.c.b16 %v1131, %v1130
    %v1197 = vpack.c.b16 %v1133, %v1132
    %1262 = vmatprep.subr.bf16.mxu0 0
    %1263 = vmatpush1.bf16.xpose.msra.mxu0 %v1134
    %1264 = vmatprep.subr.bf16.mxu0 0
    %1265 = vmatpush1.bf16.xpose.msra.mxu0 %v1135
    %1266 = vmatprep.subr.bf16.mxu0 0
    %1267 = vmatpush1.bf16.xpose.msra.mxu0 %v1136
    %1268 = vmatprep.subr.bf16.mxu0 0
    %1269 = vmatpush1.bf16.xpose.msra.mxu0 %v1137
    %1270 = vmatprep.subr.bf16.mxu0 0
    %1271 = vmatpush1.bf16.xpose.msra.mxu0 %v1138
    %1272 = vmatprep.subr.bf16.mxu0 0
    %1273 = vmatpush1.bf16.xpose.msra.mxu0 %v1139
    %1274 = vmatprep.subr.bf16.mxu0 0
    %1275 = vmatpush1.bf16.xpose.msra.mxu0 %v1140
    %1276 = vmatprep.subr.bf16.mxu0 0
    %1277 = vmatpush1.bf16.xpose.msra.mxu0 %v1141
    %1278 = vmatprep.subr.bf16.mxu0 0
    %1279 = vmatpush1.bf16.xpose.msra.mxu0 %v1142
    %1280 = vmatprep.subr.bf16.mxu0 0
    %1281 = vmatpush1.bf16.xpose.msra.mxu0 %v1143
    %1282 = vmatprep.subr.bf16.mxu0 0
    %1283 = vmatpush1.bf16.xpose.msra.mxu0 %v1144
    %1284 = vmatprep.subr.bf16.mxu0 0
    %1285 = vmatpush1.bf16.xpose.msra.mxu0 %v1145
    %1286 = vmatprep.subr.bf16.mxu0 0
    %1287 = vmatpush1.bf16.xpose.msra.mxu0 %v1146
    %1288 = vmatprep.subr.bf16.mxu0 0
    %1289 = vmatpush1.bf16.xpose.msra.mxu0 %v1147
    %1290 = vmatprep.subr.bf16.mxu0 0
    %1291 = vmatpush1.bf16.xpose.msra.mxu0 %v1148
    %1292 = vmatprep.subr.bf16.mxu0 0
    %1293 = vmatpush1.bf16.xpose.msra.mxu0 %v1149
    %1294 = vmatprep.mubr.bf16.mxu0 0
    %1295 = vmatmul.mubr.bf16.gmra.mrb[0].mxu0 %v749
    %v1296 = vpop.f32.mrb[0].mxu0
    %v1297 = vadd.f32 0.0, %v1296
    %v1298 = vpop.f32.mrb[0].mxu0
    %v1299 = vadd.f32 0.0, %v1298
    %v1300 = vpop.f32.mrb[0].mxu0
    %v1301 = vpop.f32.mrb[0].mxu0
    %1302 = vdwg.mxu0
    %1303 = vmatprep.subr.bf16.mxu0 0
    %1304 = vmatpush1.bf16.xpose.msra.mxu0 %v1150
    %1305 = vmatprep.subr.bf16.mxu0 0
    %1306 = vmatpush1.bf16.xpose.msra.mxu0 %v1151
    %1307 = vmatprep.subr.bf16.mxu0 0
    %1308 = vmatpush1.bf16.xpose.msra.mxu0 %v1152
    %1309 = vmatprep.subr.bf16.mxu0 0
    %1310 = vmatpush1.bf16.xpose.msra.mxu0 %v1153
    %1311 = vmatprep.subr.bf16.mxu0 0
    %1312 = vmatpush1.bf16.xpose.msra.mxu0 %v1154
    %1313 = vmatprep.subr.bf16.mxu0 0
    %1314 = vmatpush1.bf16.xpose.msra.mxu0 %v1155
    %1315 = vmatprep.subr.bf16.mxu0 0
    %1316 = vmatpush1.bf16.xpose.msra.mxu0 %v1156
    %1317 = vmatprep.subr.bf16.mxu0 0
    %1318 = vmatpush1.bf16.xpose.msra.mxu0 %v1157
    %1319 = vmatprep.subr.bf16.mxu0 0
    %1320 = vmatpush1.bf16.xpose.msra.mxu0 %v1158
    %1321 = vmatprep.subr.bf16.mxu0 0
    %1322 = vmatpush1.bf16.xpose.msra.mxu0 %v1159
    %1323 = vmatprep.subr.bf16.mxu0 0
    %1324 = vmatpush1.bf16.xpose.msra.mxu0 %v1160
    %1325 = vmatprep.subr.bf16.mxu0 0
    %1326 = vmatpush1.bf16.xpose.msra.mxu0 %v1161
    %1327 = vmatprep.subr.bf16.mxu0 0
    %1328 = vmatpush1.bf16.xpose.msra.mxu0 %v1162
    %1329 = vmatprep.subr.bf16.mxu0 0
    %1330 = vmatpush1.bf16.xpose.msra.mxu0 %v1163
    %1331 = vmatprep.subr.bf16.mxu0 0
    %1332 = vmatpush1.bf16.xpose.msra.mxu0 %v1164
    %1333 = vmatprep.subr.bf16.mxu0 0
    %1334 = vmatpush1.bf16.xpose.msra.mxu0 %v1165
    %1335 = vmatprep.mubr.bf16.mxu0 0
    %1336 = vmatmul.mubr.bf16.gmra.mrb[0].mxu0 %v749
    %v1337 = vpop.f32.mrb[0].mxu0
    %v1338 = vadd.f32 0.0, %v1337
    %v1339 = vpop.f32.mrb[0].mxu0
    %v1340 = vadd.f32 0.0, %v1339
    %v1341 = vpop.f32.mrb[0].mxu0
    %v1342 = vpop.f32.mrb[0].mxu0
    %1343 = vdwg.mxu0
    %1344 = vmatprep.subr.bf16.mxu0 0
    %1345 = vmatpush1.bf16.xpose.msra.mxu0 %v1166
    %1346 = vmatprep.subr.bf16.mxu0 0
    %1347 = vmatpush1.bf16.xpose.msra.mxu0 %v1167
    %1348 = vmatprep.subr.bf16.mxu0 0
    %1349 = vmatpush1.bf16.xpose.msra.mxu0 %v1168
    %1350 = vmatprep.subr.bf16.mxu0 0
    %1351 = vmatpush1.bf16.xpose.msra.mxu0 %v1169
    %1352 = vmatprep.subr.bf16.mxu0 0
    %1353 = vmatpush1.bf16.xpose.msra.mxu0 %v1170
    %1354 = vmatprep.subr.bf16.mxu0 0
    %1355 = vmatpush1.bf16.xpose.msra.mxu0 %v1171
    %1356 = vmatprep.subr.bf16.mxu0 0
    %1357 = vmatpush1.bf16.xpose.msra.mxu0 %v1172
    %1358 = vmatprep.subr.bf16.mxu0 0
    %1359 = vmatpush1.bf16.xpose.msra.mxu0 %v1173
    %1360 = vmatprep.subr.bf16.mxu0 0
    %1361 = vmatpush1.bf16.xpose.msra.mxu0 %v1174
    %1362 = vmatprep.subr.bf16.mxu0 0
    %1363 = vmatpush1.bf16.xpose.msra.mxu0 %v1175
    %1364 = vmatprep.subr.bf16.mxu0 0
    %1365 = vmatpush1.bf16.xpose.msra.mxu0 %v1176
    %1366 = vmatprep.subr.bf16.mxu0 0
    %1367 = vmatpush1.bf16.xpose.msra.mxu0 %v1177
    %1368 = vmatprep.subr.bf16.mxu0 0
    %1369 = vmatpush1.bf16.xpose.msra.mxu0 %v1178
    %1370 = vmatprep.subr.bf16.mxu0 0
    %1371 = vmatpush1.bf16.xpose.msra.mxu0 %v1179
    %1372 = vmatprep.subr.bf16.mxu0 0
    %1373 = vmatpush1.bf16.xpose.msra.mxu0 %v1180
    %1374 = vmatprep.subr.bf16.mxu0 0
    %1375 = vmatpush1.bf16.xpose.msra.mxu0 %v1181
    %1376 = vmatprep.mubr.bf16.mxu0 0
    %1377 = vmatmul.mubr.bf16.gmra.mrb[0].mxu0 %v749
    %v1378 = vpop.f32.mrb[0].mxu0
    %v1379 = vadd.f32 0.0, %v1378
    %v1380 = vpop.f32.mrb[0].mxu0
    %v1381 = vadd.f32 0.0, %v1380
    %v1382 = vpop.f32.mrb[0].mxu0
    %v1383 = vpop.f32.mrb[0].mxu0
    %1384 = vdwg.mxu0
    %1385 = vmatprep.subr.bf16.mxu0 0
    %1386 = vmatpush1.bf16.xpose.msra.mxu0 %v1182
    %1387 = vmatprep.subr.bf16.mxu0 0
    %1388 = vmatpush1.bf16.xpose.msra.mxu0 %v1183
    %1389 = vmatprep.subr.bf16.mxu0 0
    %1390 = vmatpush1.bf16.xpose.msra.mxu0 %v1184
    %1391 = vmatprep.subr.bf16.mxu0 0
    %1392 = vmatpush1.bf16.xpose.msra.mxu0 %v1185
    %1393 = vmatprep.subr.bf16.mxu0 0
    %1394 = vmatpush1.bf16.xpose.msra.mxu0 %v1186
    %1395 = vmatprep.subr.bf16.mxu0 0
    %1396 = vmatpush1.bf16.xpose.msra.mxu0 %v1187
    %1397 = vmatprep.subr.bf16.mxu0 0
    %1398 = vmatpush1.bf16.xpose.msra.mxu0 %v1188
    %1399 = vmatprep.subr.bf16.mxu0 0
    %1400 = vmatpush1.bf16.xpose.msra.mxu0 %v1189
    %1401 = vmatprep.subr.bf16.mxu0 0
    %1402 = vmatpush1.bf16.xpose.msra.mxu0 %v1190
    %1403 = vmatprep.subr.bf16.mxu0 0
    %1404 = vmatpush1.bf16.xpose.msra.mxu0 %v1191
    %1405 = vmatprep.subr.bf16.mxu0 0
    %1406 = vmatpush1.bf16.xpose.msra.mxu0 %v1192
    %1407 = vmatprep.subr.bf16.mxu0 0
    %1408 = vmatpush1.bf16.xpose.msra.mxu0 %v1193
    %1409 = vmatprep.subr.bf16.mxu0 0
    %1410 = vmatpush1.bf16.xpose.msra.mxu0 %v1194
    %1411 = vmatprep.subr.bf16.mxu0 0
    %1412 = vmatpush1.bf16.xpose.msra.mxu0 %v1195
    %1413 = vmatprep.subr.bf16.mxu0 0
    %1414 = vmatpush1.bf16.xpose.msra.mxu0 %v1196
    %1415 = vmatprep.subr.bf16.mxu0 0
    %1416 = vmatpush1.bf16.xpose.msra.mxu0 %v1197
    %1417 = vmatprep.mubr.bf16.mxu0 0
    %1418 = vmatmul.mubr.bf16.gmra.mrb[0].mxu0 %v749
    %v1419 = vpop.f32.mrb[0].mxu0
    %v1420 = vadd.f32 0.0, %v1419
    %v1421 = vpop.f32.mrb[0].mxu0
    %v1422 = vadd.f32 0.0, %v1421
    %v1423 = vpop.f32.mrb[0].mxu0
    %v1424 = vpop.f32.mrb[0].mxu0
    %1425 = vdwg.mxu0
    %p1426 = scmp.eq.s32.totalorder 0, 0
    // Predicated region
    $region26: #{tpu_custom_call.1} parent=1 // pred_check
      %p1427 = pneg %p1426
    $region27: #{tpu_custom_call.1} parent=1 // pred_check_branch
      %1429 = sbr.rel (%p1427) target = $region29
    $region28: #{tpu_custom_call.1} parent=1 // pred_region
      %v1430 = vld [vmem:[#allocation7] sm:$0xff]
      %v1432 = vlaneseq
      %v1433 = vshrl.u32 %v1432, 7
      %v1434 = vsub.s32 0, %v1433
      %v1435 = vrot.slane %v1430, %v1434
      %v1436 = vlaneseq
      %v1437 = vshrl.u32 %v1436, 7
      %v1438 = vsub.s32 1, %v1437
      %v1439 = vrot.slane %v1430, %v1438
      %v1440 = vlaneseq
      %v1441 = vshrl.u32 %v1440, 7
      %v1442 = vsub.s32 2, %v1441
      %v1443 = vrot.slane %v1430, %v1442
      %v1444 = vlaneseq
      %v1445 = vshrl.u32 %v1444, 7
      %v1446 = vsub.s32 3, %v1445
      %v1447 = vrot.slane %v1430, %v1446
      %v1448 = vlaneseq
      %v1449 = vshrl.u32 %v1448, 7
      %v1450 = vsub.s32 4, %v1449
      %v1451 = vrot.slane %v1430, %v1450
      %v1452 = vlaneseq
      %v1453 = vshrl.u32 %v1452, 7
      %v1454 = vsub.s32 5, %v1453
      %v1455 = vrot.slane %v1430, %v1454
      %v1456 = vlaneseq
      %v1457 = vshrl.u32 %v1456, 7
      %v1458 = vsub.s32 6, %v1457
      %v1459 = vrot.slane %v1430, %v1458
      %v1460 = vlaneseq
      %v1461 = vshrl.u32 %v1460, 7
      %v1462 = vsub.s32 7, %v1461
      %v1463 = vrot.slane %v1430, %v1462
      %v1472 = vadd.f32 %v1297, %v1435
      %v1473 = vadd.f32 %v1299, %v1439
      %v1474 = vadd.f32 %v1338, %v1443
      %v1475 = vadd.f32 %v1340, %v1447
      %v1476 = vadd.f32 %v1379, %v1451
      %v1477 = vadd.f32 %v1381, %v1455
      %v1478 = vadd.f32 %v1420, %v1459
      %v1479 = vadd.f32 %v1422, %v1463
      %1480 = vst [vmem:[#allocation8] sm:$0xff] %v1472
      %1481 = vst [vmem:[#allocation8 + $0x8] sm:$0xff] %v1473
      %1482 = vst [vmem:[#allocation8 + $0x10] sm:$0xff] %v1474
      %1483 = vst [vmem:[#allocation8 + $0x18] sm:$0xff] %v1475
      %1484 = vst [vmem:[#allocation8 + $0x20] sm:$0xff] %v1476
      %1485 = vst [vmem:[#allocation8 + $0x28] sm:$0xff] %v1477
      %1486 = vst [vmem:[#allocation8 + $0x30] sm:$0xff] %v1478
      %1487 = vst [vmem:[#allocation8 + $0x38] sm:$0xff] %v1479
    $region29: #{tpu_custom_call.1} parent=1 // pred_fallthru
      _
    %p1488 = scmp.ne.s32.totalorder 0, 0
    // Predicated region
    $region30: #{tpu_custom_call.1} parent=1 // pred_check
      %p1489 = pneg %p1488
    $region31: #{tpu_custom_call.1} parent=1 // pred_check_branch
      %1491 = sbr.rel (%p1489) target = $region33
    $region32: #{tpu_custom_call.1} parent=1 // pred_region
      %v1492 = vld [vmem:[#allocation8] sm:$0xff]
      %v1493 = vld [vmem:[#allocation8 + $0x8] sm:$0xff]
      %v1494 = vld [vmem:[#allocation8 + $0x10] sm:$0xff]
      %v1495 = vld [vmem:[#allocation8 + $0x18] sm:$0xff]
      %v1496 = vld [vmem:[#allocation8 + $0x20] sm:$0xff]
      %v1497 = vld [vmem:[#allocation8 + $0x28] sm:$0xff]
      %v1498 = vld [vmem:[#allocation8 + $0x30] sm:$0xff]
      %v1499 = vld [vmem:[#allocation8 + $0x38] sm:$0xff]
      %v1500 = vadd.f32 %v1492, %v1297
      %v1501 = vadd.f32 %v1493, %v1299
      %v1502 = vadd.f32 %v1494, %v1338
      %v1503 = vadd.f32 %v1495, %v1340
      %v1504 = vadd.f32 %v1496, %v1379
      %v1505 = vadd.f32 %v1497, %v1381
      %v1506 = vadd.f32 %v1498, %v1420
      %v1507 = vadd.f32 %v1499, %v1422
      %1508 = vst [vmem:[#allocation8] sm:$0xff] %v1500
      %1509 = vst [vmem:[#allocation8 + $0x8] sm:$0xff] %v1501
      %1510 = vst [vmem:[#allocation8 + $0x10] sm:$0xff] %v1502
      %1511 = vst [vmem:[#allocation8 + $0x18] sm:$0xff] %v1503
      %1512 = vst [vmem:[#allocation8 + $0x20] sm:$0xff] %v1504
      %1513 = vst [vmem:[#allocation8 + $0x28] sm:$0xff] %v1505
      %1514 = vst [vmem:[#allocation8 + $0x30] sm:$0xff] %v1506
      %1515 = vst [vmem:[#allocation8 + $0x38] sm:$0xff] %v1507
    $region33: #{tpu_custom_call.1} parent=1 // pred_fallthru
      _
    // Predicated region
    $region34: #{tpu_custom_call.1} parent=1 // pred_check
      _
    $region35: #{tpu_custom_call.1} parent=1 // pred_check_branch
      %1517 = sbr.rel (0) target = $region37
    $region36: #{tpu_custom_call.1} parent=1 // pred_region
      %s1519 = ssub.s32 1024, 1024
      %1520 = vsyncadd [#allocation4], %s1519
      %s1522 = sshll.u32 [#allocation8], 4
      %s1523 = int_to_ptr.vmem [resolvable:$true] %s1522
      %1525 = dma.vmem_to_hbm [thread:$0]  %s1523, 1024, %s3, [#allocation4]
    $region37: #{tpu_custom_call.1} parent=1 // pred_fallthru
      _
    // Predicated region
    $region38: #{tpu_custom_call.1} parent=1 // pred_check
      _
    $region39: #{tpu_custom_call.1} parent=1 // pred_check_branch
      %1527 = sbr.rel (0) target = $region41
    $region40: #{tpu_custom_call.1} parent=1 // pred_region
      %s1529 = ssub.s32 128, 128
      %1530 = vsyncadd [#allocation10], %s1529
      %s1532 = sshll.u32 [#allocation9], 4
      %s1533 = int_to_ptr.vmem [resolvable:$true] %s1532
      %1535 = dma.vmem_to_hbm [thread:$0]  %s1533, 128, %s4, [#allocation10]
    $region41: #{tpu_custom_call.1} parent=1 // pred_fallthru
      _
    // Predicated region
    $region42: #{tpu_custom_call.1} parent=1 // pred_check
      _
    $region43: #{tpu_custom_call.1} parent=1 // pred_check_branch
      %1537 = sbr.rel (0) target = $region45
    $region44: #{tpu_custom_call.1} parent=1 // pred_region
      %s1539 = ssub.s32 128, 128
      %1540 = vsyncadd [#allocation10], %s1539
      %s1542 = sshll.u32 [#allocation11], 4
      %s1543 = int_to_ptr.vmem [resolvable:$true] %s1542
      %1545 = dma.vmem_to_hbm [thread:$0]  %s1543, 128, %s5, [#allocation10]
    $region45: #{tpu_custom_call.1} parent=1 // pred_fallthru
      _
    // Predicated region
    $region46: #{tpu_custom_call.1} parent=1 // pred_check
      _
    $region47: #{tpu_custom_call.1} parent=1 // pred_check_branch
      %1547 = sbr.rel (0) target = $region49
    $region48: #{tpu_custom_call.1} parent=1 // pred_region
      %1548 = dma.done [#allocation4], 1024
    $region49: #{tpu_custom_call.1} parent=1 // pred_fallthru
      _
    // Predicated region
    $region50: #{tpu_custom_call.1} parent=1 // pred_check
      _
    $region51: #{tpu_custom_call.1} parent=1 // pred_check_branch
      %1550 = sbr.rel (0) target = $region53
    $region52: #{tpu_custom_call.1} parent=1 // pred_region
      %1551 = dma.done [#allocation10], 128
    $region53: #{tpu_custom_call.1} parent=1 // pred_fallthru
      _
    // Predicated region
    $region54: #{tpu_custom_call.1} parent=1 // pred_check
      _
    $region55: #{tpu_custom_call.1} parent=1 // pred_check_branch
      %1553 = sbr.rel (0) target = $region57
    $region56: #{tpu_custom_call.1} parent=1 // pred_region
      %1554 = dma.done [#allocation10], 128
    $region57: #{tpu_custom_call.1} parent=1 // pred_fallthru
      _
    %1555 = vsyncpa [#allocation3], 1
    %1556 = vsyncpa [#allocation6], 1
    %1557 = vsyncpa [#allocation4], 1
    %1558 = vsyncpa [#allocation10], 1

// kernel: tpu_custom_call.1
$region0: #{tpu_custom_call.1}
  #allocation0 [shape = 'u32[]', space=smem, size = 0x4, offset = 0x4, fixed_abs, tag = 'smem constant byte address 0x4 - core index']
  #allocation1 [shape = 'u32[144,128]{1,0:T(1,128)}', space=vmem, size = 0x12000, scoped, tag = 'internal scratch']
  %s0 = inlined_call_operand.hbm [shape: f32[8,1024], index: 0, kind: input, shape index: {}]
  %s1 = inlined_call_operand.hbm [shape: bf16[1024,128], index: 1, kind: input, shape index: {}]
  %s2 = inlined_call_operand.hbm [shape: f32[1,1024], index: 2, kind: input, shape index: {}]
  %s3 = inlined_call_operand.hbm [shape: f32[8,1024], index: 3, kind: output, shape index: {0}]
  %s4 = inlined_call_operand.hbm [shape: f32[8,128], index: 4, kind: output, shape index: {1}]
  %s5 = inlined_call_operand.hbm [shape: f32[8,128], index: 5, kind: output, shape index: {2}]
  %6 = xla_tuple %s3, %s4, %s5
  %s7 = sld [smem:[#allocation0]]
  $region58: #{tpu_custom_call.1} parent=0
    _
  %s9 = ssub.s32 1, %s7
  %s10 = scalar_select 0, %s9, %s7
  $region1: #{tpu_custom_call.1} parent=0
    #allocation2 [shape = 'u8[32768]{0}', space=vmem, size = 0x8000, scoped, tag = 'input window, operand 0, single buffered']
    #allocation3 [shape = 's32[1]{0}', space=sflag, size = 0x4, scoped, tag = 'scoped memory for tpu_custom_call.1']
    #allocation4 [shape = 's32[1]{0}', space=sflag, size = 0x4, scoped, tag = 'scoped memory for tpu_custom_call.1']
    #allocation5 [shape = 'u8[262144]{0}', space=vmem, size = 0x40000, scoped, tag = 'input window, operand 1, single buffered']
    #allocation6 [shape = 's32[1]{0}', space=sflag, size = 0x4, scoped, tag = 'scoped memory for tpu_custom_call.1']
    #allocation7 [shape = 'u8[4096]{0}', space=vmem, size = 0x1000, scoped, tag = 'input window, operand 2, single buffered']
    #allocation8 [shape = 'u8[32768]{0}', space=vmem, size = 0x8000, scoped, tag = 'output window, operand 0, single buffered']
    #allocation9 [shape = 'u8[4096]{0}', space=vmem, size = 0x1000, scoped, tag = 'output window, operand 1, single buffered']
    #allocation10 [shape = 's32[1]{0}', space=sflag, size = 0x4, scoped, tag = 'scoped memory for tpu_custom_call.1']
    #allocation11 [shape = 'u8[4096]{0}', space=vmem, size = 0x1000, scoped, tag = 'output window, operand 2, single buffered']
    %11 = vsyncpa [#allocation3], 0
    %12 = vsyncpa [#allocation6], 0
    %13 = vsyncpa [#allocation4], 0
    %14 = vsyncpa [#allocation10], 0
    // Predicated region
    $region2: #{tpu_custom_call.1} parent=1 // pred_check
      _
    $region3: #{tpu_custom_call.1} parent=1 // pred_check_branch
      %16 = sbr.rel (0) target = $region5
    $region4: #{tpu_custom_call.1} parent=1 // pred_region
      %s18 = ssub.s32 1024, 1024
      %19 = vsyncadd [#allocation3], %s18
      %s21 = sshll.u32 [#allocation2], 4
      %s22 = int_to_ptr.vmem [resolvable:$true] %s21
      %24 = dma.hbm_to_vmem [thread:$0]  %s0, 1024, %s22, [#allocation3]
    $region5: #{tpu_custom_call.1} parent=1 // pred_fallthru
      _
    // Predicated region
    $region6: #{tpu_custom_call.1} parent=1 // pred_check
      _
    $region7: #{tpu_custom_call.1} parent=1 // pred_check_branch
      %26 = sbr.rel (0) target = $region9
    $region8: #{tpu_custom_call.1} parent=1 // pred_region
      %s28 = ssub.s32 8192, 8192
      %29 = vsyncadd [#allocation6], %s28
      %s30 = sshll.u32 [#allocation5], 4
      %s31 = int_to_ptr.vmem [resolvable:$true] %s30
      %36 = dma.hbm_to_vmem [thread:$0]  %s1, 8192, %s31, [#allocation6], 64, 64, 4
    $region9: #{tpu_custom_call.1} parent=1 // pred_fallthru
      _
    // Predicated region
    $region10: #{tpu_custom_call.1} parent=1 // pred_check
      _
    $region11: #{tpu_custom_call.1} parent=1 // pred_check_branch
      %38 = sbr.rel (0) target = $region13
    $region12: #{tpu_custom_call.1} parent=1 // pred_region
      %s40 = ssub.s32 128, 128
      %41 = vsyncadd [#allocation6], %s40
      %s43 = sshll.u32 [#allocation7], 4
      %s44 = int_to_ptr.vmem [resolvable:$true] %s43
      %46 = dma.hbm_to_vmem [thread:$0]  %s2, 128, %s44, [#allocation6]
    $region13: #{tpu_custom_call.1} parent=1 // pred_fallthru
      _
    // Predicated region
    $region14: #{tpu_custom_call.1} parent=1 // pred_check
      _
    $region15: #{tpu_custom_call.1} parent=1 // pred_check_branch
      %48 = sbr.rel (0) target = $region17
    $region16: #{tpu_custom_call.1} parent=1 // pred_region
      %49 = dma.done [#allocation3], 1024
    $region17: #{tpu_custom_call.1} parent=1 // pred_fallthru
      _
    // Predicated region
    $region18: #{tpu_custom_call.1} parent=1 // pred_check
      _
    $region19: #{tpu_custom_call.1} parent=1 // pred_check_branch
      %51 = sbr.rel (0) target = $region21
    $region20: #{tpu_custom_call.1} parent=1 // pred_region
      %52 = dma.done [#allocation6], 8192
    $region21: #{tpu_custom_call.1} parent=1 // pred_fallthru
      _
    // Predicated region
    $region22: #{tpu_custom_call.1} parent=1 // pred_check
      _
    $region23: #{tpu_custom_call.1} parent=1 // pred_check_branch
      %54 = sbr.rel (0) target = $region25
    $region24: #{tpu_custom_call.1} parent=1 // pred_region
      %55 = dma.done [#allocation6], 128
    $region25: #{tpu_custom_call.1} parent=1 // pred_fallthru
      _
    %v57 = vld [vmem:[#allocation2] sm:$0xff]
    %v58 = vld [vmem:[#allocation2 + $0x8] sm:$0xff]
    %v59 = vld [vmem:[#allocation2 + $0x10] sm:$0xff]
    %v60 = vld [vmem:[#allocation2 + $0x18] sm:$0xff]
    %v61 = vld [vmem:[#allocation2 + $0x20] sm:$0xff]
    %v62 = vld [vmem:[#allocation2 + $0x28] sm:$0xff]
    %v63 = vld [vmem:[#allocation2 + $0x30] sm:$0xff]
    %v64 = vld [vmem:[#allocation2 + $0x38] sm:$0xff]
    %v65 = vpack.c.bf16 %v57, %v57
    %v66 = vpack.c.bf16 %v58, %v58
    %v67 = vpack.c.bf16 %v59, %v59
    %v68 = vpack.c.bf16 %v60, %v60
    %v69 = vpack.c.bf16 %v61, %v61
    %v70 = vpack.c.bf16 %v62, %v62
    %v71 = vpack.c.bf16 %v63, %v63
    %v72 = vpack.c.bf16 %v64, %v64
    %v73 = vld [vmem:[#allocation5] sm:$0xf]
    %v74 = vld [vmem:[#allocation5 + $0x4] sm:$0xf]
    %v75 = vld [vmem:[#allocation5 + $0x8] sm:$0xf]
    %v76 = vld [vmem:[#allocation5 + $0xc] sm:$0xf]
    %v77 = vld [vmem:[#allocation5 + $0x10] sm:$0xf]
    %v78 = vld [vmem:[#allocation5 + $0x14] sm:$0xf]
    %v79 = vld [vmem:[#allocation5 + $0x18] sm:$0xf]
    %v80 = vld [vmem:[#allocation5 + $0x1c] sm:$0xf]
    %v81 = vld [vmem:[#allocation5 + $0x20] sm:$0xf]
    %v82 = vld [vmem:[#allocation5 + $0x24] sm:$0xf]
    %v83 = vld [vmem:[#allocation5 + $0x28] sm:$0xf]
    %v84 = vld [vmem:[#allocation5 + $0x2c] sm:$0xf]
    %v85 = vld [vmem:[#allocation5 + $0x30] sm:$0xf]
    %v86 = vld [vmem:[#allocation5 + $0x34] sm:$0xf]
    %v87 = vld [vmem:[#allocation5 + $0x38] sm:$0xf]
    %v88 = vld [vmem:[#allocation5 + $0x3c] sm:$0xf]
    %v89 = vld [vmem:[#allocation5 + $0x40] sm:$0xf]
    %v90 = vld [vmem:[#allocation5 + $0x44] sm:$0xf]
    %v91 = vld [vmem:[#allocation5 + $0x48] sm:$0xf]
    %v92 = vld [vmem:[#allocation5 + $0x4c] sm:$0xf]
    %v93 = vld [vmem:[#allocation5 + $0x50] sm:$0xf]
    %v94 = vld [vmem:[#allocation5 + $0x54] sm:$0xf]
    %v95 = vld [vmem:[#allocation5 + $0x58] sm:$0xf]
    %v96 = vld [vmem:[#allocation5 + $0x5c] sm:$0xf]
    %v97 = vld [vmem:[#allocation5 + $0x60] sm:$0xf]
    %v98 = vld [vmem:[#allocation5 + $0x64] sm:$0xf]
    %v99 = vld [vmem:[#allocation5 + $0x68] sm:$0xf]
    %v100 = vld [vmem:[#allocation5 + $0x6c] sm:$0xf]
    %v101 = vld [vmem:[#allocation5 + $0x70] sm:$0xf]
    %v102 = vld [vmem:[#allocation5 + $0x74] sm:$0xf]
    %v103 = vld [vmem:[#allocation5 + $0x78] sm:$0xf]
    %v104 = vld [vmem:[#allocation5 + $0x7c] sm:$0xf]
    %v105 = vld [vmem:[#allocation5 + $0x80] sm:$0xf]
    %v106 = vld [vmem:[#allocation5 + $0x84] sm:$0xf]
    %v107 = vld [vmem:[#allocation5 + $0x88] sm:$0xf]
    %v108 = vld [vmem:[#allocation5 + $0x8c] sm:$0xf]
    %v109 = vld [vmem:[#allocation5 + $0x90] sm:$0xf]
    %v110 = vld [vmem:[#allocation5 + $0x94] sm:$0xf]
    %v111 = vld [vmem:[#allocation5 + $0x98] sm:$0xf]
    %v112 = vld [vmem:[#allocation5 + $0x9c] sm:$0xf]
    %v113 = vld [vmem:[#allocation5 + $0xa0] sm:$0xf]
    %v114 = vld [vmem:[#allocation5 + $0xa4] sm:$0xf]
    %v115 = vld [vmem:[#allocation5 + $0xa8] sm:$0xf]
    %v116 = vld [vmem:[#allocation5 + $0xac] sm:$0xf]
    %v117 = vld [vmem:[#allocation5 + $0xb0] sm:$0xf]
    %v118 = vld [vmem:[#allocation5 + $0xb4] sm:$0xf]
    %v119 = vld [vmem:[#allocation5 + $0xb8] sm:$0xf]
    %v120 = vld [vmem:[#allocation5 + $0xbc] sm:$0xf]
    %v121 = vld [vmem:[#allocation5 + $0xc0] sm:$0xf]
    %v122 = vld [vmem:[#allocation5 + $0xc4] sm:$0xf]
    %v123 = vld [vmem:[#allocation5 + $0xc8] sm:$0xf]
    %v124 = vld [vmem:[#allocation5 + $0xcc] sm:$0xf]
    %v125 = vld [vmem:[#allocation5 + $0xd0] sm:$0xf]
    %v126 = vld [vmem:[#allocation5 + $0xd4] sm:$0xf]
    %v127 = vld [vmem:[#allocation5 + $0xd8] sm:$0xf]
    %v128 = vld [vmem:[#allocation5 + $0xdc] sm:$0xf]
    %v129 = vld [vmem:[#allocation5 + $0xe0] sm:$0xf]
    %v130 = vld [vmem:[#allocation5 + $0xe4] sm:$0xf]
    %v131 = vld [vmem:[#allocation5 + $0xe8] sm:$0xf]
    %v132 = vld [vmem:[#allocation5 + $0xec] sm:$0xf]
    %v133 = vld [vmem:[#allocation5 + $0xf0] sm:$0xf]
    %v134 = vld [vmem:[#allocation5 + $0xf4] sm:$0xf]
    %v135 = vld [vmem:[#allocation5 + $0xf8] sm:$0xf]
    %v136 = vld [vmem:[#allocation5 + $0xfc] sm:$0xf]
    %v137 = vld [vmem:[#allocation5 + $0x100] sm:$0xf]
    %v138 = vld [vmem:[#allocation5 + $0x104] sm:$0xf]
    %v139 = vld [vmem:[#allocation5 + $0x108] sm:$0xf]
    %v140 = vld [vmem:[#allocation5 + $0x10c] sm:$0xf]
    %v141 = vld [vmem:[#allocation5 + $0x110] sm:$0xf]
    %v142 = vld [vmem:[#allocation5 + $0x114] sm:$0xf]
    %v143 = vld [vmem:[#allocation5 + $0x118] sm:$0xf]
    %v144 = vld [vmem:[#allocation5 + $0x11c] sm:$0xf]
    %v145 = vld [vmem:[#allocation5 + $0x120] sm:$0xf]
    %v146 = vld [vmem:[#allocation5 + $0x124] sm:$0xf]
    %v147 = vld [vmem:[#allocation5 + $0x128] sm:$0xf]
    %v148 = vld [vmem:[#allocation5 + $0x12c] sm:$0xf]
    %v149 = vld [vmem:[#allocation5 + $0x130] sm:$0xf]
    %v150 = vld [vmem:[#allocation5 + $0x134] sm:$0xf]
    %v151 = vld [vmem:[#allocation5 + $0x138] sm:$0xf]
    %v152 = vld [vmem:[#allocation5 + $0x13c] sm:$0xf]
    %v153 = vld [vmem:[#allocation5 + $0x140] sm:$0xf]
    %v154 = vld [vmem:[#allocation5 + $0x144] sm:$0xf]
    %v155 = vld [vmem:[#allocation5 + $0x148] sm:$0xf]
    %v156 = vld [vmem:[#allocation5 + $0x14c] sm:$0xf]
    %v157 = vld [vmem:[#allocation5 + $0x150] sm:$0xf]
    %v158 = vld [vmem:[#allocation5 + $0x154] sm:$0xf]
    %v159 = vld [vmem:[#allocation5 + $0x158] sm:$0xf]
    %v160 = vld [vmem:[#allocation5 + $0x15c] sm:$0xf]
    %v161 = vld [vmem:[#allocation5 + $0x160] sm:$0xf]
    %v162 = vld [vmem:[#allocation5 + $0x164] sm:$0xf]
    %v163 = vld [vmem:[#allocation5 + $0x168] sm:$0xf]
    %v164 = vld [vmem:[#allocation5 + $0x16c] sm:$0xf]
    %v165 = vld [vmem:[#allocation5 + $0x170] sm:$0xf]
    %v166 = vld [vmem:[#allocation5 + $0x174] sm:$0xf]
    %v167 = vld [vmem:[#allocation5 + $0x178] sm:$0xf]
    %v168 = vld [vmem:[#allocation5 + $0x17c] sm:$0xf]
    %v169 = vld [vmem:[#allocation5 + $0x180] sm:$0xf]
    %v170 = vld [vmem:[#allocation5 + $0x184] sm:$0xf]
    %v171 = vld [vmem:[#allocation5 + $0x188] sm:$0xf]
    %v172 = vld [vmem:[#allocation5 + $0x18c] sm:$0xf]
    %v173 = vld [vmem:[#allocation5 + $0x190] sm:$0xf]
    %v174 = vld [vmem:[#allocation5 + $0x194] sm:$0xf]
    %v175 = vld [vmem:[#allocation5 + $0x198] sm:$0xf]
    %v176 = vld [vmem:[#allocation5 + $0x19c] sm:$0xf]
    %v177 = vld [vmem:[#allocation5 + $0x1a0] sm:$0xf]
    %v178 = vld [vmem:[#allocation5 + $0x1a4] sm:$0xf]
    %v179 = vld [vmem:[#allocation5 + $0x1a8] sm:$0xf]
    %v180 = vld [vmem:[#allocation5 + $0x1ac] sm:$0xf]
    %v181 = vld [vmem:[#allocation5 + $0x1b0] sm:$0xf]
    %v182 = vld [vmem:[#allocation5 + $0x1b4] sm:$0xf]
    %v183 = vld [vmem:[#allocation5 + $0x1b8] sm:$0xf]
    %v184 = vld [vmem:[#allocation5 + $0x1bc] sm:$0xf]
    %v185 = vld [vmem:[#allocation5 + $0x1c0] sm:$0xf]
    %v186 = vld [vmem:[#allocation5 + $0x1c4] sm:$0xf]
    %v187 = vld [vmem:[#allocation5 + $0x1c8] sm:$0xf]
    %v188 = vld [vmem:[#allocation5 + $0x1cc] sm:$0xf]
    %v189 = vld [vmem:[#allocation5 + $0x1d0] sm:$0xf]
    %v190 = vld [vmem:[#allocation5 + $0x1d4] sm:$0xf]
    %v191 = vld [vmem:[#allocation5 + $0x1d8] sm:$0xf]
    %v192 = vld [vmem:[#allocation5 + $0x1dc] sm:$0xf]
    %v193 = vld [vmem:[#allocation5 + $0x1e0] sm:$0xf]
    %v194 = vld [vmem:[#allocation5 + $0x1e4] sm:$0xf]
    %v195 = vld [vmem:[#allocation5 + $0x1e8] sm:$0xf]
    %v196 = vld [vmem:[#allocation5 + $0x1ec] sm:$0xf]
    %v197 = vld [vmem:[#allocation5 + $0x1f0] sm:$0xf]
    %v198 = vld [vmem:[#allocation5 + $0x1f4] sm:$0xf]
    %v199 = vld [vmem:[#allocation5 + $0x1f8] sm:$0xf]
    %v200 = vld [vmem:[#allocation5 + $0x1fc] sm:$0xf]
    %v329 = vunpack.c.l.b16 %v73
    %v330 = vunpack.c.l.b16 %v74
    %v331 = vunpack.c.l.b16 %v75
    %v332 = vunpack.c.l.b16 %v76
    %v333 = vunpack.c.l.b16 %v77
    %v334 = vunpack.c.l.b16 %v78
    %v335 = vunpack.c.l.b16 %v79
    %v336 = vunpack.c.l.b16 %v80
    %v337 = vunpack.c.l.b16 %v81
    %v338 = vunpack.c.l.b16 %v82
    %v339 = vunpack.c.l.b16 %v83
    %v340 = vunpack.c.l.b16 %v84
    %v341 = vunpack.c.l.b16 %v85
    %v342 = vunpack.c.l.b16 %v86
    %v343 = vunpack.c.l.b16 %v87
    %v344 = vunpack.c.l.b16 %v88
    %v345 = vunpack.c.l.b16 %v89
    %v346 = vunpack.c.l.b16 %v90
    %v347 = vunpack.c.l.b16 %v91
    %v348 = vunpack.c.l.b16 %v92
    %v349 = vunpack.c.l.b16 %v93
    %v350 = vunpack.c.l.b16 %v94
    %v351 = vunpack.c.l.b16 %v95
    %v352 = vunpack.c.l.b16 %v96
    %v353 = vunpack.c.l.b16 %v97
    %v354 = vunpack.c.l.b16 %v98
    %v355 = vunpack.c.l.b16 %v99
    %v356 = vunpack.c.l.b16 %v100
    %v357 = vunpack.c.l.b16 %v101
    %v358 = vunpack.c.l.b16 %v102
    %v359 = vunpack.c.l.b16 %v103
    %v360 = vunpack.c.l.b16 %v104
    %v361 = vunpack.c.l.b16 %v105
    %v362 = vunpack.c.l.b16 %v106
    %v363 = vunpack.c.l.b16 %v107
    %v364 = vunpack.c.l.b16 %v108
    %v365 = vunpack.c.l.b16 %v109
    %v366 = vunpack.c.l.b16 %v110
    %v367 = vunpack.c.l.b16 %v111
    %v368 = vunpack.c.l.b16 %v112
    %v369 = vunpack.c.l.b16 %v113
    %v370 = vunpack.c.l.b16 %v114
    %v371 = vunpack.c.l.b16 %v115
    %v372 = vunpack.c.l.b16 %v116
    %v373 = vunpack.c.l.b16 %v117
    %v374 = vunpack.c.l.b16 %v118
    %v375 = vunpack.c.l.b16 %v119
    %v376 = vunpack.c.l.b16 %v120
    %v377 = vunpack.c.l.b16 %v121
    %v378 = vunpack.c.l.b16 %v122
    %v379 = vunpack.c.l.b16 %v123
    %v380 = vunpack.c.l.b16 %v124
    %v381 = vunpack.c.l.b16 %v125
    %v382 = vunpack.c.l.b16 %v126
    %v383 = vunpack.c.l.b16 %v127
    %v384 = vunpack.c.l.b16 %v128
    %v385 = vunpack.c.l.b16 %v129
    %v386 = vunpack.c.l.b16 %v130
    %v387 = vunpack.c.l.b16 %v131
    %v388 = vunpack.c.l.b16 %v132
    %v389 = vunpack.c.l.b16 %v133
    %v390 = vunpack.c.l.b16 %v134
    %v391 = vunpack.c.l.b16 %v135
    %v392 = vunpack.c.l.b16 %v136
    %v393 = vunpack.c.l.b16 %v137
    %v394 = vunpack.c.l.b16 %v138
    %v395 = vunpack.c.l.b16 %v139
    %v396 = vunpack.c.l.b16 %v140
    %v397 = vunpack.c.l.b16 %v141
    %v398 = vunpack.c.l.b16 %v142
    %v399 = vunpack.c.l.b16 %v143
    %v400 = vunpack.c.l.b16 %v144
    %v401 = vunpack.c.l.b16 %v145
    %v402 = vunpack.c.l.b16 %v146
    %v403 = vunpack.c.l.b16 %v147
    %v404 = vunpack.c.l.b16 %v148
    %v405 = vunpack.c.l.b16 %v149
    %v406 = vunpack.c.l.b16 %v150
    %v407 = vunpack.c.l.b16 %v151
    %v408 = vunpack.c.l.b16 %v152
    %v409 = vunpack.c.l.b16 %v153
    %v410 = vunpack.c.l.b16 %v154
    %v411 = vunpack.c.l.b16 %v155
    %v412 = vunpack.c.l.b16 %v156
    %v413 = vunpack.c.l.b16 %v157
    %v414 = vunpack.c.l.b16 %v158
    %v415 = vunpack.c.l.b16 %v159
    %v416 = vunpack.c.l.b16 %v160
    %v417 = vunpack.c.l.b16 %v161
    %v418 = vunpack.c.l.b16 %v162
    %v419 = vunpack.c.l.b16 %v163
    %v420 = vunpack.c.l.b16 %v164
    %v421 = vunpack.c.l.b16 %v165
    %v422 = vunpack.c.l.b16 %v166
    %v423 = vunpack.c.l.b16 %v167
    %v424 = vunpack.c.l.b16 %v168
    %v425 = vunpack.c.l.b16 %v169
    %v426 = vunpack.c.l.b16 %v170
    %v427 = vunpack.c.l.b16 %v171
    %v428 = vunpack.c.l.b16 %v172
    %v429 = vunpack.c.l.b16 %v173
    %v430 = vunpack.c.l.b16 %v174
    %v431 = vunpack.c.l.b16 %v175
    %v432 = vunpack.c.l.b16 %v176
    %v433 = vunpack.c.l.b16 %v177
    %v434 = vunpack.c.l.b16 %v178
    %v435 = vunpack.c.l.b16 %v179
    %v436 = vunpack.c.l.b16 %v180
    %v437 = vunpack.c.l.b16 %v181
    %v438 = vunpack.c.l.b16 %v182
    %v439 = vunpack.c.l.b16 %v183
    %v440 = vunpack.c.l.b16 %v184
    %v441 = vunpack.c.l.b16 %v185
    %v442 = vunpack.c.l.b16 %v186
    %v443 = vunpack.c.l.b16 %v187
    %v444 = vunpack.c.l.b16 %v188
    %v445 = vunpack.c.l.b16 %v189
    %v446 = vunpack.c.l.b16 %v190
    %v447 = vunpack.c.l.b16 %v191
    %v448 = vunpack.c.l.b16 %v192
    %v449 = vunpack.c.l.b16 %v193
    %v450 = vunpack.c.l.b16 %v194
    %v451 = vunpack.c.l.b16 %v195
    %v452 = vunpack.c.l.b16 %v196
    %v453 = vunpack.c.l.b16 %v197
    %v454 = vunpack.c.l.b16 %v198
    %v455 = vunpack.c.l.b16 %v199
    %v456 = vunpack.c.l.b16 %v200
    %v457 = vpack.c.b16 %v330, %v329
    %v458 = vpack.c.b16 %v332, %v331
    %v459 = vpack.c.b16 %v334, %v333
    %v460 = vpack.c.b16 %v336, %v335
    %v461 = vpack.c.b16 %v338, %v337
    %v462 = vpack.c.b16 %v340, %v339
    %v463 = vpack.c.b16 %v342, %v341
    %v464 = vpack.c.b16 %v344, %v343
    %v465 = vpack.c.b16 %v346, %v345
    %v466 = vpack.c.b16 %v348, %v347
    %v467 = vpack.c.b16 %v350, %v349
    %v468 = vpack.c.b16 %v352, %v351
    %v469 = vpack.c.b16 %v354, %v353
    %v470 = vpack.c.b16 %v356, %v355
    %v471 = vpack.c.b16 %v358, %v357
    %v472 = vpack.c.b16 %v360, %v359
    %v473 = vpack.c.b16 %v362, %v361
    %v474 = vpack.c.b16 %v364, %v363
    %v475 = vpack.c.b16 %v366, %v365
    %v476 = vpack.c.b16 %v368, %v367
    %v477 = vpack.c.b16 %v370, %v369
    %v478 = vpack.c.b16 %v372, %v371
    %v479 = vpack.c.b16 %v374, %v373
    %v480 = vpack.c.b16 %v376, %v375
    %v481 = vpack.c.b16 %v378, %v377
    %v482 = vpack.c.b16 %v380, %v379
    %v483 = vpack.c.b16 %v382, %v381
    %v484 = vpack.c.b16 %v384, %v383
    %v485 = vpack.c.b16 %v386, %v385
    %v486 = vpack.c.b16 %v388, %v387
    %v487 = vpack.c.b16 %v390, %v389
    %v488 = vpack.c.b16 %v392, %v391
    %v489 = vpack.c.b16 %v394, %v393
    %v490 = vpack.c.b16 %v396, %v395
    %v491 = vpack.c.b16 %v398, %v397
    %v492 = vpack.c.b16 %v400, %v399
    %v493 = vpack.c.b16 %v402, %v401
    %v494 = vpack.c.b16 %v404, %v403
    %v495 = vpack.c.b16 %v406, %v405
    %v496 = vpack.c.b16 %v408, %v407
    %v497 = vpack.c.b16 %v410, %v409
    %v498 = vpack.c.b16 %v412, %v411
    %v499 = vpack.c.b16 %v414, %v413
    %v500 = vpack.c.b16 %v416, %v415
    %v501 = vpack.c.b16 %v418, %v417
    %v502 = vpack.c.b16 %v420, %v419
    %v503 = vpack.c.b16 %v422, %v421
    %v504 = vpack.c.b16 %v424, %v423
    %v505 = vpack.c.b16 %v426, %v425
    %v506 = vpack.c.b16 %v428, %v427
    %v507 = vpack.c.b16 %v430, %v429
    %v508 = vpack.c.b16 %v432, %v431
    %v509 = vpack.c.b16 %v434, %v433
    %v510 = vpack.c.b16 %v436, %v435
    %v511 = vpack.c.b16 %v438, %v437
    %v512 = vpack.c.b16 %v440, %v439
    %v513 = vpack.c.b16 %v442, %v441
    %v514 = vpack.c.b16 %v444, %v443
    %v515 = vpack.c.b16 %v446, %v445
    %v516 = vpack.c.b16 %v448, %v447
    %v517 = vpack.c.b16 %v450, %v449
    %v518 = vpack.c.b16 %v452, %v451
    %v519 = vpack.c.b16 %v454, %v453
    %v520 = vpack.c.b16 %v456, %v455
    %585 = vmatprep.subr.bf16.mxu0 0
    %586 = vmatpush1.bf16.msra.mxu0 %v457
    %587 = vmatprep.subr.bf16.mxu0 0
    %588 = vmatpush1.bf16.msra.mxu0 %v458
    %589 = vmatprep.subr.bf16.mxu0 0
    %590 = vmatpush1.bf16.msra.mxu0 %v459
    %591 = vmatprep.subr.bf16.mxu0 0
    %592 = vmatpush1.bf16.msra.mxu0 %v460
    %593 = vmatprep.subr.bf16.mxu0 0
    %594 = vmatpush1.bf16.msra.mxu0 %v461
    %595 = vmatprep.subr.bf16.mxu0 0
    %596 = vmatpush1.bf16.msra.mxu0 %v462
    %597 = vmatprep.subr.bf16.mxu0 0
    %598 = vmatpush1.bf16.msra.mxu0 %v463
    %599 = vmatprep.subr.bf16.mxu0 0
    %600 = vmatpush1.bf16.msra.mxu0 %v464
    %601 = vmatprep.subr.bf16.mxu0 0
    %602 = vmatpush1.bf16.msra.mxu0 %v465
    %603 = vmatprep.subr.bf16.mxu0 0
    %604 = vmatpush1.bf16.msra.mxu0 %v466
    %605 = vmatprep.subr.bf16.mxu0 0
    %606 = vmatpush1.bf16.msra.mxu0 %v467
    %607 = vmatprep.subr.bf16.mxu0 0
    %608 = vmatpush1.bf16.msra.mxu0 %v468
    %609 = vmatprep.subr.bf16.mxu0 0
    %610 = vmatpush1.bf16.msra.mxu0 %v469
    %611 = vmatprep.subr.bf16.mxu0 0
    %612 = vmatpush1.bf16.msra.mxu0 %v470
    %613 = vmatprep.subr.bf16.mxu0 0
    %614 = vmatpush1.bf16.msra.mxu0 %v471
    %615 = vmatprep.subr.bf16.mxu0 0
    %616 = vmatpush1.bf16.msra.mxu0 %v472
    %617 = vmatprep.mubr.bf16.mxu0 %v66
    %618 = vmatmul.mubr.bf16.gmra.mrb[0].mxu0 %v65
    %v619 = vpop.f32.mrb[0].mxu0
    %v620 = vadd.f32 0.0, %v619
    %v621 = vpop.f32.mrb[0].mxu0
    %v622 = vpop.f32.mrb[0].mxu0
    %v623 = vpop.f32.mrb[0].mxu0
    %624 = vdwg.mxu0
    %625 = vmatprep.subr.bf16.mxu0 0
    %626 = vmatpush1.bf16.msra.mxu0 %v473
    %627 = vmatprep.subr.bf16.mxu0 0
    %628 = vmatpush1.bf16.msra.mxu0 %v474
    %629 = vmatprep.subr.bf16.mxu0 0
    %630 = vmatpush1.bf16.msra.mxu0 %v475
    %631 = vmatprep.subr.bf16.mxu0 0
    %632 = vmatpush1.bf16.msra.mxu0 %v476
    %633 = vmatprep.subr.bf16.mxu0 0
    %634 = vmatpush1.bf16.msra.mxu0 %v477
    %635 = vmatprep.subr.bf16.mxu0 0
    %636 = vmatpush1.bf16.msra.mxu0 %v478
    %637 = vmatprep.subr.bf16.mxu0 0
    %638 = vmatpush1.bf16.msra.mxu0 %v479
    %639 = vmatprep.subr.bf16.mxu0 0
    %640 = vmatpush1.bf16.msra.mxu0 %v480
    %641 = vmatprep.subr.bf16.mxu0 0
    %642 = vmatpush1.bf16.msra.mxu0 %v481
    %643 = vmatprep.subr.bf16.mxu0 0
    %644 = vmatpush1.bf16.msra.mxu0 %v482
    %645 = vmatprep.subr.bf16.mxu0 0
    %646 = vmatpush1.bf16.msra.mxu0 %v483
    %647 = vmatprep.subr.bf16.mxu0 0
    %648 = vmatpush1.bf16.msra.mxu0 %v484
    %649 = vmatprep.subr.bf16.mxu0 0
    %650 = vmatpush1.bf16.msra.mxu0 %v485
    %651 = vmatprep.subr.bf16.mxu0 0
    %652 = vmatpush1.bf16.msra.mxu0 %v486
    %653 = vmatprep.subr.bf16.mxu0 0
    %654 = vmatpush1.bf16.msra.mxu0 %v487
    %655 = vmatprep.subr.bf16.mxu0 0
    %656 = vmatpush1.bf16.msra.mxu0 %v488
    %657 = vmatprep.mubr.bf16.mxu0 %v68
    %658 = vmatmul.mubr.bf16.gmra.mrb[0].mxu0 %v67
    %v659 = vpop.f32.mrb[0].mxu0
    %v660 = vadd.f32 %v620, %v659
    %v661 = vpop.f32.mrb[0].mxu0
    %v662 = vpop.f32.mrb[0].mxu0
    %v663 = vpop.f32.mrb[0].mxu0
    %664 = vdwg.mxu0
    %665 = vmatprep.subr.bf16.mxu0 0
    %666 = vmatpush1.bf16.msra.mxu0 %v489
    %667 = vmatprep.subr.bf16.mxu0 0
    %668 = vmatpush1.bf16.msra.mxu0 %v490
    %669 = vmatprep.subr.bf16.mxu0 0
    %670 = vmatpush1.bf16.msra.mxu0 %v491
    %671 = vmatprep.subr.bf16.mxu0 0
    %672 = vmatpush1.bf16.msra.mxu0 %v492
    %673 = vmatprep.subr.bf16.mxu0 0
    %674 = vmatpush1.bf16.msra.mxu0 %v493
    %675 = vmatprep.subr.bf16.mxu0 0
    %676 = vmatpush1.bf16.msra.mxu0 %v494
    %677 = vmatprep.subr.bf16.mxu0 0
    %678 = vmatpush1.bf16.msra.mxu0 %v495
    %679 = vmatprep.subr.bf16.mxu0 0
    %680 = vmatpush1.bf16.msra.mxu0 %v496
    %681 = vmatprep.subr.bf16.mxu0 0
    %682 = vmatpush1.bf16.msra.mxu0 %v497
    %683 = vmatprep.subr.bf16.mxu0 0
    %684 = vmatpush1.bf16.msra.mxu0 %v498
    %685 = vmatprep.subr.bf16.mxu0 0
    %686 = vmatpush1.bf16.msra.mxu0 %v499
    %687 = vmatprep.subr.bf16.mxu0 0
    %688 = vmatpush1.bf16.msra.mxu0 %v500
    %689 = vmatprep.subr.bf16.mxu0 0
    %690 = vmatpush1.bf16.msra.mxu0 %v501
    %691 = vmatprep.subr.bf16.mxu0 0
    %692 = vmatpush1.bf16.msra.mxu0 %v502
    %693 = vmatprep.subr.bf16.mxu0 0
    %694 = vmatpush1.bf16.msra.mxu0 %v503
    %695 = vmatprep.subr.bf16.mxu0 0
    %696 = vmatpush1.bf16.msra.mxu0 %v504
    %697 = vmatprep.mubr.bf16.mxu0 %v70
    %698 = vmatmul.mubr.bf16.gmra.mrb[0].mxu0 %v69
    %v699 = vpop.f32.mrb[0].mxu0
    %v700 = vadd.f32 %v660, %v699
    %v701 = vpop.f32.mrb[0].mxu0
    %v702 = vpop.f32.mrb[0].mxu0
    %v703 = vpop.f32.mrb[0].mxu0
    %704 = vdwg.mxu0
    %705 = vmatprep.subr.bf16.mxu0 0
    %706 = vmatpush1.bf16.msra.mxu0 %v505
    %707 = vmatprep.subr.bf16.mxu0 0
    %708 = vmatpush1.bf16.msra.mxu0 %v506
    %709 = vmatprep.subr.bf16.mxu0 0
    %710 = vmatpush1.bf16.msra.mxu0 %v507
    %711 = vmatprep.subr.bf16.mxu0 0
    %712 = vmatpush1.bf16.msra.mxu0 %v508
    %713 = vmatprep.subr.bf16.mxu0 0
    %714 = vmatpush1.bf16.msra.mxu0 %v509
    %715 = vmatprep.subr.bf16.mxu0 0
    %716 = vmatpush1.bf16.msra.mxu0 %v510
    %717 = vmatprep.subr.bf16.mxu0 0
    %718 = vmatpush1.bf16.msra.mxu0 %v511
    %719 = vmatprep.subr.bf16.mxu0 0
    %720 = vmatpush1.bf16.msra.mxu0 %v512
    %721 = vmatprep.subr.bf16.mxu0 0
    %722 = vmatpush1.bf16.msra.mxu0 %v513
    %723 = vmatprep.subr.bf16.mxu0 0
    %724 = vmatpush1.bf16.msra.mxu0 %v514
    %725 = vmatprep.subr.bf16.mxu0 0
    %726 = vmatpush1.bf16.msra.mxu0 %v515
    %727 = vmatprep.subr.bf16.mxu0 0
    %728 = vmatpush1.bf16.msra.mxu0 %v516
    %729 = vmatprep.subr.bf16.mxu0 0
    %730 = vmatpush1.bf16.msra.mxu0 %v517
    %731 = vmatprep.subr.bf16.mxu0 0
    %732 = vmatpush1.bf16.msra.mxu0 %v518
    %733 = vmatprep.subr.bf16.mxu0 0
    %734 = vmatpush1.bf16.msra.mxu0 %v519
    %735 = vmatprep.subr.bf16.mxu0 0
    %736 = vmatpush1.bf16.msra.mxu0 %v520
    %737 = vmatprep.mubr.bf16.mxu0 %v72
    %738 = vmatmul.mubr.bf16.gmra.mrb[0].mxu0 %v71
    %v739 = vpop.f32.mrb[0].mxu0
    %v740 = vadd.f32 %v700, %v739
    %v741 = vpop.f32.mrb[0].mxu0
    %v742 = vpop.f32.mrb[0].mxu0
    %v743 = vpop.f32.mrb[0].mxu0
    %744 = vdwg.mxu0
    %v745 = vmax.f32 %v740, 0.0
    %746 = vst [vmem:[#allocation9] sm:$0xff] %v745
    %v747 = vadd.f32 %v745, 0.0
    %748 = vst [vmem:[#allocation11] sm:$0xff] %v747
    %v749 = vpack.c.bf16 %v745, %v745
    %v750 = vld [vmem:[#allocation5] sm:$0xf]
    %v751 = vld [vmem:[#allocation5 + $0x4] sm:$0xf]
    %v752 = vld [vmem:[#allocation5 + $0x8] sm:$0xf]
    %v753 = vld [vmem:[#allocation5 + $0xc] sm:$0xf]
    %v754 = vld [vmem:[#allocation5 + $0x10] sm:$0xf]
    %v755 = vld [vmem:[#allocation5 + $0x14] sm:$0xf]
    %v756 = vld [vmem:[#allocation5 + $0x18] sm:$0xf]
    %v757 = vld [vmem:[#allocation5 + $0x1c] sm:$0xf]
    %v758 = vld [vmem:[#allocation5 + $0x20] sm:$0xf]
    %v759 = vld [vmem:[#allocation5 + $0x24] sm:$0xf]
    %v760 = vld [vmem:[#allocation5 + $0x28] sm:$0xf]
    %v761 = vld [vmem:[#allocation5 + $0x2c] sm:$0xf]
    %v762 = vld [vmem:[#allocation5 + $0x30] sm:$0xf]
    %v763 = vld [vmem:[#allocation5 + $0x34] sm:$0xf]
    %v764 = vld [vmem:[#allocation5 + $0x38] sm:$0xf]
    %v765 = vld [vmem:[#allocation5 + $0x3c] sm:$0xf]
    %v766 = vld [vmem:[#allocation5 + $0x40] sm:$0xf]
    %v767 = vld [vmem:[#allocation5 + $0x44] sm:$0xf]
    %v768 = vld [vmem:[#allocation5 + $0x48] sm:$0xf]
    %v769 = vld [vmem:[#allocation5 + $0x4c] sm:$0xf]
    %v770 = vld [vmem:[#allocation5 + $0x50] sm:$0xf]
    %v771 = vld [vmem:[#allocation5 + $0x54] sm:$0xf]
    %v772 = vld [vmem:[#allocation5 + $0x58] sm:$0xf]
    %v773 = vld [vmem:[#allocation5 + $0x5c] sm:$0xf]
    %v774 = vld [vmem:[#allocation5 + $0x60] sm:$0xf]
    %v775 = vld [vmem:[#allocation5 + $0x64] sm:$0xf]
    %v776 = vld [vmem:[#allocation5 + $0x68] sm:$0xf]
    %v777 = vld [vmem:[#allocation5 + $0x6c] sm:$0xf]
    %v778 = vld [vmem:[#allocation5 + $0x70] sm:$0xf]
    %v779 = vld [vmem:[#allocation5 + $0x74] sm:$0xf]
    %v780 = vld [vmem:[#allocation5 + $0x78] sm:$0xf]
    %v781 = vld [vmem:[#allocation5 + $0x7c] sm:$0xf]
    %v782 = vld [vmem:[#allocation5 + $0x80] sm:$0xf]
    %v783 = vld [vmem:[#allocation5 + $0x84] sm:$0xf]
    %v784 = vld [vmem:[#allocation5 + $0x88] sm:$0xf]
    %v785 = vld [vmem:[#allocation5 + $0x8c] sm:$0xf]
    %v786 = vld [vmem:[#allocation5 + $0x90] sm:$0xf]
    %v787 = vld [vmem:[#allocation5 + $0x94] sm:$0xf]
    %v788 = vld [vmem:[#allocation5 + $0x98] sm:$0xf]
    %v789 = vld [vmem:[#allocation5 + $0x9c] sm:$0xf]
    %v790 = vld [vmem:[#allocation5 + $0xa0] sm:$0xf]
    %v791 = vld [vmem:[#allocation5 + $0xa4] sm:$0xf]
    %v792 = vld [vmem:[#allocation5 + $0xa8] sm:$0xf]
    %v793 = vld [vmem:[#allocation5 + $0xac] sm:$0xf]
    %v794 = vld [vmem:[#allocation5 + $0xb0] sm:$0xf]
    %v795 = vld [vmem:[#allocation5 + $0xb4] sm:$0xf]
    %v796 = vld [vmem:[#allocation5 + $0xb8] sm:$0xf]
    %v797 = vld [vmem:[#allocation5 + $0xbc] sm:$0xf]
    %v798 = vld [vmem:[#allocation5 + $0xc0] sm:$0xf]
    %v799 = vld [vmem:[#allocation5 + $0xc4] sm:$0xf]
    %v800 = vld [vmem:[#allocation5 + $0xc8] sm:$0xf]
    %v801 = vld [vmem:[#allocation5 + $0xcc] sm:$0xf]
    %v802 = vld [vmem:[#allocation5 + $0xd0] sm:$0xf]
    %v803 = vld [vmem:[#allocation5 + $0xd4] sm:$0xf]
    %v804 = vld [vmem:[#allocation5 + $0xd8] sm:$0xf]
    %v805 = vld [vmem:[#allocation5 + $0xdc] sm:$0xf]
    %v806 = vld [vmem:[#allocation5 + $0xe0] sm:$0xf]
    %v807 = vld [vmem:[#allocation5 + $0xe4] sm:$0xf]
    %v808 = vld [vmem:[#allocation5 + $0xe8] sm:$0xf]
    %v809 = vld [vmem:[#allocation5 + $0xec] sm:$0xf]
    %v810 = vld [vmem:[#allocation5 + $0xf0] sm:$0xf]
    %v811 = vld [vmem:[#allocation5 + $0xf4] sm:$0xf]
    %v812 = vld [vmem:[#allocation5 + $0xf8] sm:$0xf]
    %v813 = vld [vmem:[#allocation5 + $0xfc] sm:$0xf]
    %v814 = vld [vmem:[#allocation5 + $0x100] sm:$0xf]
    %v815 = vld [vmem:[#allocation5 + $0x104] sm:$0xf]
    %v816 = vld [vmem:[#allocation5 + $0x108] sm:$0xf]
    %v817 = vld [vmem:[#allocation5 + $0x10c] sm:$0xf]
    %v818 = vld [vmem:[#allocation5 + $0x110] sm:$0xf]
    %v819 = vld [vmem:[#allocation5 + $0x114] sm:$0xf]
    %v820 = vld [vmem:[#allocation5 + $0x118] sm:$0xf]
    %v821 = vld [vmem:[#allocation5 + $0x11c] sm:$0xf]
    %v822 = vld [vmem:[#allocation5 + $0x120] sm:$0xf]
    %v823 = vld [vmem:[#allocation5 + $0x124] sm:$0xf]
    %v824 = vld [vmem:[#allocation5 + $0x128] sm:$0xf]
    %v825 = vld [vmem:[#allocation5 + $0x12c] sm:$0xf]
    %v826 = vld [vmem:[#allocation5 + $0x130] sm:$0xf]
    %v827 = vld [vmem:[#allocation5 + $0x134] sm:$0xf]
    %v828 = vld [vmem:[#allocation5 + $0x138] sm:$0xf]
    %v829 = vld [vmem:[#allocation5 + $0x13c] sm:$0xf]
    %v830 = vld [vmem:[#allocation5 + $0x140] sm:$0xf]
    %v831 = vld [vmem:[#allocation5 + $0x144] sm:$0xf]
    %v832 = vld [vmem:[#allocation5 + $0x148] sm:$0xf]
    %v833 = vld [vmem:[#allocation5 + $0x14c] sm:$0xf]
    %v834 = vld [vmem:[#allocation5 + $0x150] sm:$0xf]
    %v835 = vld [vmem:[#allocation5 + $0x154] sm:$0xf]
    %v836 = vld [vmem:[#allocation5 + $0x158] sm:$0xf]
    %v837 = vld [vmem:[#allocation5 + $0x15c] sm:$0xf]
    %v838 = vld [vmem:[#allocation5 + $0x160] sm:$0xf]
    %v839 = vld [vmem:[#allocation5 + $0x164] sm:$0xf]
    %v840 = vld [vmem:[#allocation5 + $0x168] sm:$0xf]
    %v841 = vld [vmem:[#allocation5 + $0x16c] sm:$0xf]
    %v842 = vld [vmem:[#allocation5 + $0x170] sm:$0xf]
    %v843 = vld [vmem:[#allocation5 + $0x174] sm:$0xf]
    %v844 = vld [vmem:[#allocation5 + $0x178] sm:$0xf]
    %v845 = vld [vmem:[#allocation5 + $0x17c] sm:$0xf]
    %v846 = vld [vmem:[#allocation5 + $0x180] sm:$0xf]
    %v847 = vld [vmem:[#allocation5 + $0x184] sm:$0xf]
    %v848 = vld [vmem:[#allocation5 + $0x188] sm:$0xf]
    %v849 = vld [vmem:[#allocation5 + $0x18c] sm:$0xf]
    %v850 = vld [vmem:[#allocation5 + $0x190] sm:$0xf]
    %v851 = vld [vmem:[#allocation5 + $0x194] sm:$0xf]
    %v852 = vld [vmem:[#allocation5 + $0x198] sm:$0xf]
    %v853 = vld [vmem:[#allocation5 + $0x19c] sm:$0xf]
    %v854 = vld [vmem:[#allocation5 + $0x1a0] sm:$0xf]
    %v855 = vld [vmem:[#allocation5 + $0x1a4] sm:$0xf]
    %v856 = vld [vmem:[#allocation5 + $0x1a8] sm:$0xf]
    %v857 = vld [vmem:[#allocation5 + $0x1ac] sm:$0xf]
    %v858 = vld [vmem:[#allocation5 + $0x1b0] sm:$0xf]
    %v859 = vld [vmem:[#allocation5 + $0x1b4] sm:$0xf]
    %v860 = vld [vmem:[#allocation5 + $0x1b8] sm:$0xf]
    %v861 = vld [vmem:[#allocation5 + $0x1bc] sm:$0xf]
    %v862 = vld [vmem:[#allocation5 + $0x1c0] sm:$0xf]
    %v863 = vld [vmem:[#allocation5 + $0x1c4] sm:$0xf]
    %v864 = vld [vmem:[#allocation5 + $0x1c8] sm:$0xf]
    %v865 = vld [vmem:[#allocation5 + $0x1cc] sm:$0xf]
    %v866 = vld [vmem:[#allocation5 + $0x1d0] sm:$0xf]
    %v867 = vld [vmem:[#allocation5 + $0x1d4] sm:$0xf]
    %v868 = vld [vmem:[#allocation5 + $0x1d8] sm:$0xf]
    %v869 = vld [vmem:[#allocation5 + $0x1dc] sm:$0xf]
    %v870 = vld [vmem:[#allocation5 + $0x1e0] sm:$0xf]
    %v871 = vld [vmem:[#allocation5 + $0x1e4] sm:$0xf]
    %v872 = vld [vmem:[#allocation5 + $0x1e8] sm:$0xf]
    %v873 = vld [vmem:[#allocation5 + $0x1ec] sm:$0xf]
    %v874 = vld [vmem:[#allocation5 + $0x1f0] sm:$0xf]
    %v875 = vld [vmem:[#allocation5 + $0x1f4] sm:$0xf]
    %v876 = vld [vmem:[#allocation5 + $0x1f8] sm:$0xf]
    %v877 = vld [vmem:[#allocation5 + $0x1fc] sm:$0xf]
    %v1006 = vunpack.c.l.b16 %v750
    %v1007 = vunpack.c.l.b16 %v751
    %v1008 = vunpack.c.l.b16 %v752
    %v1009 = vunpack.c.l.b16 %v753
    %v1010 = vunpack.c.l.b16 %v754
    %v1011 = vunpack.c.l.b16 %v755
    %v1012 = vunpack.c.l.b16 %v756
    %v1013 = vunpack.c.l.b16 %v757
    %v1014 = vunpack.c.l.b16 %v758
    %v1015 = vunpack.c.l.b16 %v759
    %v1016 = vunpack.c.l.b16 %v760
    %v1017 = vunpack.c.l.b16 %v761
    %v1018 = vunpack.c.l.b16 %v762
    %v1019 = vunpack.c.l.b16 %v763
    %v1020 = vunpack.c.l.b16 %v764
    %v1021 = vunpack.c.l.b16 %v765
    %v1022 = vunpack.c.l.b16 %v766
    %v1023 = vunpack.c.l.b16 %v767
    %v1024 = vunpack.c.l.b16 %v768
    %v1025 = vunpack.c.l.b16 %v769
    %v1026 = vunpack.c.l.b16 %v770
    %v1027 = vunpack.c.l.b16 %v771
    %v1028 = vunpack.c.l.b16 %v772
    %v1029 = vunpack.c.l.b16 %v773
    %v1030 = vunpack.c.l.b16 %v774
    %v1031 = vunpack.c.l.b16 %v775
    %v1032 = vunpack.c.l.b16 %v776
    %v1033 = vunpack.c.l.b16 %v777
    %v1034 = vunpack.c.l.b16 %v778
    %v1035 = vunpack.c.l.b16 %v779
    %v1036 = vunpack.c.l.b16 %v780
    %v1037 = vunpack.c.l.b16 %v781
    %v1038 = vunpack.c.l.b16 %v782
    %v1039 = vunpack.c.l.b16 %v783
    %v1040 = vunpack.c.l.b16 %v784
    %v1041 = vunpack.c.l.b16 %v785
    %v1042 = vunpack.c.l.b16 %v786
    %v1043 = vunpack.c.l.b16 %v787
    %v1044 = vunpack.c.l.b16 %v788
    %v1045 = vunpack.c.l.b16 %v789
    %v1046 = vunpack.c.l.b16 %v790
    %v1047 = vunpack.c.l.b16 %v791
    %v1048 = vunpack.c.l.b16 %v792
    %v1049 = vunpack.c.l.b16 %v793
    %v1050 = vunpack.c.l.b16 %v794
    %v1051 = vunpack.c.l.b16 %v795
    %v1052 = vunpack.c.l.b16 %v796
    %v1053 = vunpack.c.l.b16 %v797
    %v1054 = vunpack.c.l.b16 %v798
    %v1055 = vunpack.c.l.b16 %v799
    %v1056 = vunpack.c.l.b16 %v800
    %v1057 = vunpack.c.l.b16 %v801
    %v1058 = vunpack.c.l.b16 %v802
    %v1059 = vunpack.c.l.b16 %v803
    %v1060 = vunpack.c.l.b16 %v804
    %v1061 = vunpack.c.l.b16 %v805
    %v1062 = vunpack.c.l.b16 %v806
    %v1063 = vunpack.c.l.b16 %v807
    %v1064 = vunpack.c.l.b16 %v808
    %v1065 = vunpack.c.l.b16 %v809
    %v1066 = vunpack.c.l.b16 %v810
    %v1067 = vunpack.c.l.b16 %v811
    %v1068 = vunpack.c.l.b16 %v812
    %v1069 = vunpack.c.l.b16 %v813
    %v1070 = vunpack.c.l.b16 %v814
    %v1071 = vunpack.c.l.b16 %v815
    %v1072 = vunpack.c.l.b16 %v816
    %v1073 = vunpack.c.l.b16 %v817
    %v1074 = vunpack.c.l.b16 %v818
    %v1075 = vunpack.c.l.b16 %v819
    %v1076 = vunpack.c.l.b16 %v820
    %v1077 = vunpack.c.l.b16 %v821
    %v1078 = vunpack.c.l.b16 %v822
    %v1079 = vunpack.c.l.b16 %v823
    %v1080 = vunpack.c.l.b16 %v824
    %v1081 = vunpack.c.l.b16 %v825
    %v1082 = vunpack.c.l.b16 %v826
    %v1083 = vunpack.c.l.b16 %v827
    %v1084 = vunpack.c.l.b16 %v828
    %v1085 = vunpack.c.l.b16 %v829
    %v1086 = vunpack.c.l.b16 %v830
    %v1087 = vunpack.c.l.b16 %v831
    %v1088 = vunpack.c.l.b16 %v832
    %v1089 = vunpack.c.l.b16 %v833
    %v1090 = vunpack.c.l.b16 %v834
    %v1091 = vunpack.c.l.b16 %v835
    %v1092 = vunpack.c.l.b16 %v836
    %v1093 = vunpack.c.l.b16 %v837
    %v1094 = vunpack.c.l.b16 %v838
    %v1095 = vunpack.c.l.b16 %v839
    %v1096 = vunpack.c.l.b16 %v840
    %v1097 = vunpack.c.l.b16 %v841
    %v1098 = vunpack.c.l.b16 %v842
    %v1099 = vunpack.c.l.b16 %v843
    %v1100 = vunpack.c.l.b16 %v844
    %v1101 = vunpack.c.l.b16 %v845
    %v1102 = vunpack.c.l.b16 %v846
    %v1103 = vunpack.c.l.b16 %v847
    %v1104 = vunpack.c.l.b16 %v848
    %v1105 = vunpack.c.l.b16 %v849
    %v1106 = vunpack.c.l.b16 %v850
    %v1107 = vunpack.c.l.b16 %v851
    %v1108 = vunpack.c.l.b16 %v852
    %v1109 = vunpack.c.l.b16 %v853
    %v1110 = vunpack.c.l.b16 %v854
    %v1111 = vunpack.c.l.b16 %v855
    %v1112 = vunpack.c.l.b16 %v856
    %v1113 = vunpack.c.l.b16 %v857
    %v1114 = vunpack.c.l.b16 %v858
    %v1115 = vunpack.c.l.b16 %v859
    %v1116 = vunpack.c.l.b16 %v860
    %v1117 = vunpack.c.l.b16 %v861
    %v1118 = vunpack.c.l.b16 %v862
    %v1119 = vunpack.c.l.b16 %v863
    %v1120 = vunpack.c.l.b16 %v864
    %v1121 = vunpack.c.l.b16 %v865
    %v1122 = vunpack.c.l.b16 %v866
    %v1123 = vunpack.c.l.b16 %v867
    %v1124 = vunpack.c.l.b16 %v868
    %v1125 = vunpack.c.l.b16 %v869
    %v1126 = vunpack.c.l.b16 %v870
    %v1127 = vunpack.c.l.b16 %v871
    %v1128 = vunpack.c.l.b16 %v872
    %v1129 = vunpack.c.l.b16 %v873
    %v1130 = vunpack.c.l.b16 %v874
    %v1131 = vunpack.c.l.b16 %v875
    %v1132 = vunpack.c.l.b16 %v876
    %v1133 = vunpack.c.l.b16 %v877
    %v1134 = vpack.c.b16 %v1007, %v1006
    %v1135 = vpack.c.b16 %v1009, %v1008
    %v1136 = vpack.c.b16 %v1011, %v1010
    %v1137 = vpack.c.b16 %v1013, %v1012
    %v1138 = vpack.c.b16 %v1015, %v1014
    %v1139 = vpack.c.b16 %v1017, %v1016
    %v1140 = vpack.c.b16 %v1019, %v1018
    %v1141 = vpack.c.b16 %v1021, %v1020
    %v1142 = vpack.c.b16 %v1023, %v1022
    %v1143 = vpack.c.b16 %v1025, %v1024
    %v1144 = vpack.c.b16 %v1027, %v1026
    %v1145 = vpack.c.b16 %v1029, %v1028
    %v1146 = vpack.c.b16 %v1031, %v1030
    %v1147 = vpack.c.b16 %v1033, %v1032
    %v1148 = vpack.c.b16 %v1035, %v1034
    %v1149 = vpack.c.b16 %v1037, %v1036
    %v1150 = vpack.c.b16 %v1039, %v1038
    %v1151 = vpack.c.b16 %v1041, %v1040
    %v1152 = vpack.c.b16 %v1043, %v1042
    %v1153 = vpack.c.b16 %v1045, %v1044
    %v1154 = vpack.c.b16 %v1047, %v1046
    %v1155 = vpack.c.b16 %v1049, %v1048
    %v1156 = vpack.c.b16 %v1051, %v1050
    %v1157 = vpack.c.b16 %v1053, %v1052
    %v1158 = vpack.c.b16 %v1055, %v1054
    %v1159 = vpack.c.b16 %v1057, %v1056
    %v1160 = vpack.c.b16 %v1059, %v1058
    %v1161 = vpack.c.b16 %v1061, %v1060
    %v1162 = vpack.c.b16 %v1063, %v1062
    %v1163 = vpack.c.b16 %v1065, %v1064
    %v1164 = vpack.c.b16 %v1067, %v1066
    %v1165 = vpack.c.b16 %v1069, %v1068
    %v1166 = vpack.c.b16 %v1071, %v1070
    %v1167 = vpack.c.b16 %v1073, %v1072
    %v1168 = vpack.c.b16 %v1075, %v1074
    %v1169 = vpack.c.b16 %v1077, %v1076
    %v1170 = vpack.c.b16 %v1079, %v1078
    %v1171 = vpack.c.b16 %v1081, %v1080
    %v1172 = vpack.c.b16 %v1083, %v1082
    %v1173 = vpack.c.b16 %v1085, %v1084
    %v1174 = vpack.c.b16 %v1087, %v1086
    %v1175 = vpack.c.b16 %v1089, %v1088
    %v1176 = vpack.c.b16 %v1091, %v1090
    %v1177 = vpack.c.b16 %v1093, %v1092
    %v1178 = vpack.c.b16 %v1095, %v1094
    %v1179 = vpack.c.b16 %v1097, %v1096
    %v1180 = vpack.c.b16 %v1099, %v1098
    %v1181 = vpack.c.b16 %v1101, %v1100
    %v1182 = vpack.c.b16 %v1103, %v1102
    %v1183 = vpack.c.b16 %v1105, %v1104
    %v1184 = vpack.c.b16 %v1107, %v1106
    %v1185 = vpack.c.b16 %v1109, %v1108
    %v1186 = vpack.c.b16 %v1111, %v1110
    %v1187 = vpack.c.b16 %v1113, %v1112
    %v1188 = vpack.c.b16 %v1115, %v1114
    %v1189 = vpack.c.b16 %v1117, %v1116
    %v1190 = vpack.c.b16 %v1119, %v1118
    %v1191 = vpack.c.b16 %v1121, %v1120
    %v1192 = vpack.c.b16 %v1123, %v1122
    %v1193 = vpack.c.b16 %v1125, %v1124
    %v1194 = vpack.c.b16 %v1127, %v1126
    %v1195 = vpack.c.b16 %v1129, %v1128
    %v1196 = vpack.c.b16 %v1131, %v1130
    %v1197 = vpack.c.b16 %v1133, %v1132
    %1262 = vmatprep.subr.bf16.mxu0 0
    %1263 = vmatpush1.bf16.xpose.msra.mxu0 %v1134
    %1264 = vmatprep.subr.bf16.mxu0 0
    %1265 = vmatpush1.bf16.xpose.msra.mxu0 %v1135
    %1266 = vmatprep.subr.bf16.mxu0 0
    %1267 = vmatpush1.bf16.xpose.msra.mxu0 %v1136
    %1268 = vmatprep.subr.bf16.mxu0 0
    %1269 = vmatpush1.bf16.xpose.msra.mxu0 %v1137
    %1270 = vmatprep.subr.bf16.mxu0 0
    %1271 = vmatpush1.bf16.xpose.msra.mxu0 %v1138
    %1272 = vmatprep.subr.bf16.mxu0 0
    %1273 = vmatpush1.bf16.xpose.msra.mxu0 %v1139
    %1274 = vmatprep.subr.bf16.mxu0 0
    %1275 = vmatpush1.bf16.xpose.msra.mxu0 %v1140
    %1276 = vmatprep.subr.bf16.mxu0 0
    %1277 = vmatpush1.bf16.xpose.msra.mxu0 %v1141
    %1278 = vmatprep.subr.bf16.mxu0 0
    %1279 = vmatpush1.bf16.xpose.msra.mxu0 %v1142
    %1280 = vmatprep.subr.bf16.mxu0 0
    %1281 = vmatpush1.bf16.xpose.msra.mxu0 %v1143
    %1282 = vmatprep.subr.bf16.mxu0 0
    %1283 = vmatpush1.bf16.xpose.msra.mxu0 %v1144
    %1284 = vmatprep.subr.bf16.mxu0 0
    %1285 = vmatpush1.bf16.xpose.msra.mxu0 %v1145
    %1286 = vmatprep.subr.bf16.mxu0 0
    %1287 = vmatpush1.bf16.xpose.msra.mxu0 %v1146
    %1288 = vmatprep.subr.bf16.mxu0 0
    %1289 = vmatpush1.bf16.xpose.msra.mxu0 %v1147
    %1290 = vmatprep.subr.bf16.mxu0 0
    %1291 = vmatpush1.bf16.xpose.msra.mxu0 %v1148
    %1292 = vmatprep.subr.bf16.mxu0 0
    %1293 = vmatpush1.bf16.xpose.msra.mxu0 %v1149
    %1294 = vmatprep.mubr.bf16.mxu0 0
    %1295 = vmatmul.mubr.bf16.gmra.mrb[0].mxu0 %v749
    %v1296 = vpop.f32.mrb[0].mxu0
    %v1297 = vadd.f32 0.0, %v1296
    %v1298 = vpop.f32.mrb[0].mxu0
    %v1299 = vadd.f32 0.0, %v1298
    %v1300 = vpop.f32.mrb[0].mxu0
    %v1301 = vpop.f32.mrb[0].mxu0
    %1302 = vdwg.mxu0
    %1303 = vmatprep.subr.bf16.mxu0 0
    %1304 = vmatpush1.bf16.xpose.msra.mxu0 %v1150
    %1305 = vmatprep.subr.bf16.mxu0 0
    %1306 = vmatpush1.bf16.xpose.msra.mxu0 %v1151
    %1307 = vmatprep.subr.bf16.mxu0 0
    %1308 = vmatpush1.bf16.xpose.msra.mxu0 %v1152
    %1309 = vmatprep.subr.bf16.mxu0 0
    %1310 = vmatpush1.bf16.xpose.msra.mxu0 %v1153
    %1311 = vmatprep.subr.bf16.mxu0 0
    %1312 = vmatpush1.bf16.xpose.msra.mxu0 %v1154
    %1313 = vmatprep.subr.bf16.mxu0 0
    %1314 = vmatpush1.bf16.xpose.msra.mxu0 %v1155
    %1315 = vmatprep.subr.bf16.mxu0 0
    %1316 = vmatpush1.bf16.xpose.msra.mxu0 %v1156
    %1317 = vmatprep.subr.bf16.mxu0 0
    %1318 = vmatpush1.bf16.xpose.msra.mxu0 %v1157
    %1319 = vmatprep.subr.bf16.mxu0 0
    %1320 = vmatpush1.bf16.xpose.msra.mxu0 %v1158
    %1321 = vmatprep.subr.bf16.mxu0 0
    %1322 = vmatpush1.bf16.xpose.msra.mxu0 %v1159
    %1323 = vmatprep.subr.bf16.mxu0 0
    %1324 = vmatpush1.bf16.xpose.msra.mxu0 %v1160
    %1325 = vmatprep.subr.bf16.mxu0 0
    %1326 = vmatpush1.bf16.xpose.msra.mxu0 %v1161
    %1327 = vmatprep.subr.bf16.mxu0 0
    %1328 = vmatpush1.bf16.xpose.msra.mxu0 %v1162
    %1329 = vmatprep.subr.bf16.mxu0 0
    %1330 = vmatpush1.bf16.xpose.msra.mxu0 %v1163
    %1331 = vmatprep.subr.bf16.mxu0 0
    %1332 = vmatpush1.bf16.xpose.msra.mxu0 %v1164
    %1333 = vmatprep.subr.bf16.mxu0 0
    %1334 = vmatpush1.bf16.xpose.msra.mxu0 %v1165
    %1335 = vmatprep.mubr.bf16.mxu0 0
    %1336 = vmatmul.mubr.bf16.gmra.mrb[0].mxu0 %v749
    %v1337 = vpop.f32.mrb[0].mxu0
    %v1338 = vadd.f32 0.0, %v1337
    %v1339 = vpop.f32.mrb[0].mxu0
    %v1340 = vadd.f32 0.0, %v1339
    %v1341 = vpop.f32.mrb[0].mxu0
    %v1342 = vpop.f32.mrb[0].mxu0
    %1343 = vdwg.mxu0
    %1344 = vmatprep.subr.bf16.mxu0 0
    %1345 = vmatpush1.bf16.xpose.msra.mxu0 %v1166
    %1346 = vmatprep.subr.bf16.mxu0 0
    %1347 = vmatpush1.bf16.xpose.msra.mxu0 %v1167
    %1348 = vmatprep.subr.bf16.mxu0 0
    %1349 = vmatpush1.bf16.xpose.msra.mxu0 %v1168
    %1350 = vmatprep.subr.bf16.mxu0 0
    %1351 = vmatpush1.bf16.xpose.msra.mxu0 %v1169
    %1352 = vmatprep.subr.bf16.mxu0 0
    %1353 = vmatpush1.bf16.xpose.msra.mxu0 %v1170
    %1354 = vmatprep.subr.bf16.mxu0 0
    %1355 = vmatpush1.bf16.xpose.msra.mxu0 %v1171
    %1356 = vmatprep.subr.bf16.mxu0 0
    %1357 = vmatpush1.bf16.xpose.msra.mxu0 %v1172
    %1358 = vmatprep.subr.bf16.mxu0 0
    %1359 = vmatpush1.bf16.xpose.msra.mxu0 %v1173
    %1360 = vmatprep.subr.bf16.mxu0 0
    %1361 = vmatpush1.bf16.xpose.msra.mxu0 %v1174
    %1362 = vmatprep.subr.bf16.mxu0 0
    %1363 = vmatpush1.bf16.xpose.msra.mxu0 %v1175
    %1364 = vmatprep.subr.bf16.mxu0 0
    %1365 = vmatpush1.bf16.xpose.msra.mxu0 %v1176
    %1366 = vmatprep.subr.bf16.mxu0 0
    %1367 = vmatpush1.bf16.xpose.msra.mxu0 %v1177
    %1368 = vmatprep.subr.bf16.mxu0 0
    %1369 = vmatpush1.bf16.xpose.msra.mxu0 %v1178
    %1370 = vmatprep.subr.bf16.mxu0 0
    %1371 = vmatpush1.bf16.xpose.msra.mxu0 %v1179
    %1372 = vmatprep.subr.bf16.mxu0 0
    %1373 = vmatpush1.bf16.xpose.msra.mxu0 %v1180
    %1374 = vmatprep.subr.bf16.mxu0 0
    %1375 = vmatpush1.bf16.xpose.msra.mxu0 %v1181
    %1376 = vmatprep.mubr.bf16.mxu0 0
    %1377 = vmatmul.mubr.bf16.gmra.mrb[0].mxu0 %v749
    %v1378 = vpop.f32.mrb[0].mxu0
    %v1379 = vadd.f32 0.0, %v1378
    %v1380 = vpop.f32.mrb[0].mxu0
    %v1381 = vadd.f32 0.0, %v1380
    %v1382 = vpop.f32.mrb[0].mxu0
    %v1383 = vpop.f32.mrb[0].mxu0
    %1384 = vdwg.mxu0
    %1385 = vmatprep.subr.bf16.mxu0 0
    %1386 = vmatpush1.bf16.xpose.msra.mxu0 %v1182
    %1387 = vmatprep.subr.bf16.mxu0 0
    %1388 = vmatpush1.bf16.xpose.msra.mxu0 %v1183
    %1389 = vmatprep.subr.bf16.mxu0 0
    %1390 = vmatpush1.bf16.xpose.msra.mxu0 %v1184
    %1391 = vmatprep.subr.bf16.mxu0 0
    %1392 = vmatpush1.bf16.xpose.msra.mxu0 %v1185
    %1393 = vmatprep.subr.bf16.mxu0 0
    %1394 = vmatpush1.bf16.xpose.msra.mxu0 %v1186
    %1395 = vmatprep.subr.bf16.mxu0 0
    %1396 = vmatpush1.bf16.xpose.msra.mxu0 %v1187
    %1397 = vmatprep.subr.bf16.mxu0 0
    %1398 = vmatpush1.bf16.xpose.msra.mxu0 %v1188
    %1399 = vmatprep.subr.bf16.mxu0 0
    %1400 = vmatpush1.bf16.xpose.msra.mxu0 %v1189
    %1401 = vmatprep.subr.bf16.mxu0 0
    %1402 = vmatpush1.bf16.xpose.msra.mxu0 %v1190
    %1403 = vmatprep.subr.bf16.mxu0 0
    %1404 = vmatpush1.bf16.xpose.msra.mxu0 %v1191
    %1405 = vmatprep.subr.bf16.mxu0 0
    %1406 = vmatpush1.bf16.xpose.msra.mxu0 %v1192
    %1407 = vmatprep.subr.bf16.mxu0 0
    %1408 = vmatpush1.bf16.xpose.msra.mxu0 %v1193
    %1409 = vmatprep.subr.bf16.mxu0 0
    %1410 = vmatpush1.bf16.xpose.msra.mxu0 %v1194
    %1411 = vmatprep.subr.bf16.mxu0 0
    %1412 = vmatpush1.bf16.xpose.msra.mxu0 %v1195
    %1413 = vmatprep.subr.bf16.mxu0 0
    %1414 = vmatpush1.bf16.xpose.msra.mxu0 %v1196
    %1415 = vmatprep.subr.bf16.mxu0 0
    %1416 = vmatpush1.bf16.xpose.msra.mxu0 %v1197
    %1417 = vmatprep.mubr.bf16.mxu0 0
    %1418 = vmatmul.mubr.bf16.gmra.mrb[0].mxu0 %v749
    %v1419 = vpop.f32.mrb[0].mxu0
    %v1420 = vadd.f32 0.0, %v1419
    %v1421 = vpop.f32.mrb[0].mxu0
    %v1422 = vadd.f32 0.0, %v1421
    %v1423 = vpop.f32.mrb[0].mxu0
    %v1424 = vpop.f32.mrb[0].mxu0
    %1425 = vdwg.mxu0
    %p1426 = scmp.eq.s32.totalorder 0, 0
    // Predicated region
    $region26: #{tpu_custom_call.1} parent=1 // pred_check
      %p1427 = pneg %p1426
    $region27: #{tpu_custom_call.1} parent=1 // pred_check_branch
      %1429 = sbr.rel (%p1427) target = $region29
    $region28: #{tpu_custom_call.1} parent=1 // pred_region
      %v1430 = vld [vmem:[#allocation7] sm:$0xff]
      %v1432 = vlaneseq
      %v1433 = vshrl.u32 %v1432, 7
      %v1434 = vsub.s32 0, %v1433
      %v1435 = vrot.slane %v1430, %v1434
      %v1436 = vlaneseq
      %v1437 = vshrl.u32 %v1436, 7
      %v1438 = vsub.s32 1, %v1437
      %v1439 = vrot.slane %v1430, %v1438
      %v1440 = vlaneseq
      %v1441 = vshrl.u32 %v1440, 7
      %v1442 = vsub.s32 2, %v1441
      %v1443 = vrot.slane %v1430, %v1442
      %v1444 = vlaneseq
      %v1445 = vshrl.u32 %v1444, 7
      %v1446 = vsub.s32 3, %v1445
      %v1447 = vrot.slane %v1430, %v1446
      %v1448 = vlaneseq
      %v1449 = vshrl.u32 %v1448, 7
      %v1450 = vsub.s32 4, %v1449
      %v1451 = vrot.slane %v1430, %v1450
      %v1452 = vlaneseq
      %v1453 = vshrl.u32 %v1452, 7
      %v1454 = vsub.s32 5, %v1453
      %v1455 = vrot.slane %v1430, %v1454
      %v1456 = vlaneseq
      %v1457 = vshrl.u32 %v1456, 7
      %v1458 = vsub.s32 6, %v1457
      %v1459 = vrot.slane %v1430, %v1458
      %v1460 = vlaneseq
      %v1461 = vshrl.u32 %v1460, 7
      %v1462 = vsub.s32 7, %v1461
      %v1463 = vrot.slane %v1430, %v1462
      %v1472 = vadd.f32 %v1297, %v1435
      %v1473 = vadd.f32 %v1299, %v1439
      %v1474 = vadd.f32 %v1338, %v1443
      %v1475 = vadd.f32 %v1340, %v1447
      %v1476 = vadd.f32 %v1379, %v1451
      %v1477 = vadd.f32 %v1381, %v1455
      %v1478 = vadd.f32 %v1420, %v1459
      %v1479 = vadd.f32 %v1422, %v1463
      %1480 = vst [vmem:[#allocation8] sm:$0xff] %v1472
      %1481 = vst [vmem:[#allocation8 + $0x8] sm:$0xff] %v1473
      %1482 = vst [vmem:[#allocation8 + $0x10] sm:$0xff] %v1474
      %1483 = vst [vmem:[#allocation8 + $0x18] sm:$0xff] %v1475
      %1484 = vst [vmem:[#allocation8 + $0x20] sm:$0xff] %v1476
      %1485 = vst [vmem:[#allocation8 + $0x28] sm:$0xff] %v1477
      %1486 = vst [vmem:[#allocation8 + $0x30] sm:$0xff] %v1478
      %1487 = vst [vmem:[#allocation8 + $0x38] sm:$0xff] %v1479
    $region29: #{tpu_custom_call.1} parent=1 // pred_fallthru
      _
    %p1488 = scmp.ne.s32.totalorder 0, 0
    // Predicated region
    $region30: #{tpu_custom_call.1} parent=1 // pred_check
      %p1489 = pneg %p1488
    $region31: #{tpu_custom_call.1} parent=1 // pred_check_branch
      %1491 = sbr.rel (%p1489) target = $region33
    $region32: #{tpu_custom_call.1} parent=1 // pred_region
      %v1492 = vld [vmem:[#allocation8] sm:$0xff]
      %v1493 = vld [vmem:[#allocation8 + $0x8] sm:$0xff]
      %v1494 = vld [vmem:[#allocation8 + $0x10] sm:$0xff]
      %v1495 = vld [vmem:[#allocation8 + $0x18] sm:$0xff]
      %v1496 = vld [vmem:[#allocation8 + $0x20] sm:$0xff]
      %v1497 = vld [vmem:[#allocation8 + $0x28] sm:$0xff]
      %v1498 = vld [vmem:[#allocation8 + $0x30] sm:$0xff]
      %v1499 = vld [vmem:[#allocation8 + $0x38] sm:$0xff]
      %v1500 = vadd.f32 %v1492, %v1297
      %v1501 = vadd.f32 %v1493, %v1299
      %v1502 = vadd.f32 %v1494, %v1338
      %v1503 = vadd.f32 %v1495, %v1340
      %v1504 = vadd.f32 %v1496, %v1379
      %v1505 = vadd.f32 %v1497, %v1381
      %v1506 = vadd.f32 %v1498, %v1420
      %v1507 = vadd.f32 %v1499, %v1422
      %1508 = vst [vmem:[#allocation8] sm:$0xff] %v1500
      %1509 = vst [vmem:[#allocation8 + $0x8] sm:$0xff] %v1501
      %1510 = vst [vmem:[#allocation8 + $0x10] sm:$0xff] %v1502
      %1511 = vst [vmem:[#allocation8 + $0x18] sm:$0xff] %v1503
      %1512 = vst [vmem:[#allocation8 + $0x20] sm:$0xff] %v1504
      %1513 = vst [vmem:[#allocation8 + $0x28] sm:$0xff] %v1505
      %1514 = vst [vmem:[#allocation8 + $0x30] sm:$0xff] %v1506
      %1515 = vst [vmem:[#allocation8 + $0x38] sm:$0xff] %v1507
    $region33: #{tpu_custom_call.1} parent=1 // pred_fallthru
      _
    // Predicated region
    $region34: #{tpu_custom_call.1} parent=1 // pred_check
      _
    $region35: #{tpu_custom_call.1} parent=1 // pred_check_branch
      %1517 = sbr.rel (0) target = $region37
    $region36: #{tpu_custom_call.1} parent=1 // pred_region
      %s1519 = ssub.s32 1024, 1024
      %1520 = vsyncadd [#allocation4], %s1519
      %s1522 = sshll.u32 [#allocation8], 4
      %s1523 = int_to_ptr.vmem [resolvable:$true] %s1522
      %1525 = dma.vmem_to_hbm [thread:$0]  %s1523, 1024, %s3, [#allocation4]
    $region37: #{tpu_custom_call.1} parent=1 // pred_fallthru
      _
    // Predicated region
    $region38: #{tpu_custom_call.1} parent=1 // pred_check
      _
    $region39: #{tpu_custom_call.1} parent=1 // pred_check_branch
      %1527 = sbr.rel (0) target = $region41
    $region40: #{tpu_custom_call.1} parent=1 // pred_region
      %s1529 = ssub.s32 128, 128
      %1530 = vsyncadd [#allocation10], %s1529
      %s1532 = sshll.u32 [#allocation9], 4
      %s1533 = int_to_ptr.vmem [resolvable:$true] %s1532
      %1535 = dma.vmem_to_hbm [thread:$0]  %s1533, 128, %s4, [#allocation10]
    $region41: #{tpu_custom_call.1} parent=1 // pred_fallthru
      _
    // Predicated region
    $region42: #{tpu_custom_call.1} parent=1 // pred_check
      _
    $region43: #{tpu_custom_call.1} parent=1 // pred_check_branch
      %1537 = sbr.rel (0) target = $region45
    $region44: #{tpu_custom_call.1} parent=1 // pred_region
      %s1539 = ssub.s32 128, 128
      %1540 = vsyncadd [#allocation10], %s1539
      %s1542 = sshll.u32 [#allocation11], 4
      %s1543 = int_to_ptr.vmem [resolvable:$true] %s1542
      %1545 = dma.vmem_to_hbm [thread:$0]  %s1543, 128, %s5, [#allocation10]
    $region45: #{tpu_custom_call.1} parent=1 // pred_fallthru
      _
    // Predicated region
    $region46: #{tpu_custom_call.1} parent=1 // pred_check
      _
    $region47: #{tpu_custom_call.1} parent=1 // pred_check_branch
      %1547 = sbr.rel (0) target = $region49
    $region48: #{tpu_custom_call.1} parent=1 // pred_region
      %1548 = dma.done [#allocation4], 1024
    $region49: #{tpu_custom_call.1} parent=1 // pred_fallthru
      _
    // Predicated region
    $region50: #{tpu_custom_call.1} parent=1 // pred_check
      _
    $region51: #{tpu_custom_call.1} parent=1 // pred_check_branch
      %1550 = sbr.rel (0) target = $region53
    $region52: #{tpu_custom_call.1} parent=1 // pred_region
      %1551 = dma.done [#allocation10], 128
    $region53: #{tpu_custom_call.1} parent=1 // pred_fallthru
      _
    // Predicated region
    $region54: #{tpu_custom_call.1} parent=1 // pred_check
      _
    $region55: #{tpu_custom_call.1} parent=1 // pred_check_branch
      %1553 = sbr.rel (0) target = $region57
    $region56: #{tpu_custom_call.1} parent=1 // pred_region
      %1554 = dma.done [#allocation10], 128
    $region57: #{tpu_custom_call.1} parent=1 // pred_fallthru
      _
    %1555 = vsyncpa [#allocation3], 1
    %1556 = vsyncpa [#allocation6], 1
    %1557 = vsyncpa [#allocation4], 1
    %1558 = vsyncpa [#allocation10], 1

</llo_original>
